<compile_context>
chip_gen: v7x
topology: tpu7x:2x2x1
jax: 0.10.0
libtpu: 0.0.40
codegen_flags: <defaults>
</compile_context>

<pallas_src>
import math
from functools import partial

import jax
import jax.numpy as jnp
from jax.experimental import pallas as pl
from jax.experimental.pallas import tpu as pltpu


# ------------------------- Pallas kernel: one encoder layer, one (batch, token-tile) ----------
def encoder_layer_kernel(x_ref,
                         wq_ref, bq_ref, wk_ref, bk_ref, wv_ref, bv_ref,
                         wo_ref, bo_ref,
                         g1_ref, b1_ref,
                         w1_ref, bf1_ref, w2_ref, bf2_ref,
                         g2_ref, b2_ref,
                         out_ref,
                         *, n_head: int, eps: float, compute_dtype):
    TM, D = out_ref.shape          # token tile width, model dim
    S = x_ref.shape[0]             # full sequence length (K/V context)
    dh = D // n_head
    scale = 1.0 / math.sqrt(dh)

    x_kv = x_ref[...]                                        # (S, D) f32 — full sequence
    q_start = pl.multiple_of(pl.program_id(1) * TM, TM)
    x_q = x_ref[pl.ds(q_start, TM), :]                       # (TM, D) — query / residual tile

    def linear(inp, w_ref, b_ref):
        # bf16 operands, f32 accumulation (MXU-native); bias added in f32.
        return jnp.dot(inp.astype(compute_dtype), w_ref[...].astype(compute_dtype),
                       preferred_element_type=jnp.float32) + b_ref[...]

    def layer_norm(y, g_ref, b_ref):
        mu = jnp.mean(y, axis=-1, keepdims=True)
        var = jnp.mean((y - mu) ** 2, axis=-1, keepdims=True)   # biased var (torch LayerNorm)
        return (y - mu) * jax.lax.rsqrt(var + eps) * g_ref[...] + b_ref[...]

    # ---- multi-head self-attention: all heads batched ----
    q = linear(x_q, wq_ref, bq_ref)          # (TM, D)
    k = linear(x_kv, wk_ref, bk_ref)         # (S,  D)
    v = linear(x_kv, wv_ref, bv_ref)         # (S,  D)

    qh = q.reshape(TM, n_head, dh).transpose(1, 0, 2)        # (H, TM, dh)
    kh = k.reshape(S, n_head, dh).transpose(1, 0, 2)         # (H, S,  dh)
    vh = v.reshape(S, n_head, dh).transpose(1, 0, 2)         # (H, S,  dh)

    s = jnp.einsum("hqd,hkd->hqk",
                   qh.astype(compute_dtype), kh.astype(compute_dtype),
                   preferred_element_type=jnp.float32) * scale          # (H, TM, S) f32
    s = s - jnp.max(s, axis=-1, keepdims=True)
    p = jnp.exp(s)
    p = p * pl.reciprocal(jnp.sum(p, axis=-1, keepdims=True), approx=True)  # EUP, not VPU div
    o = jnp.einsum("hqk,hkd->hqd",
                   p.astype(compute_dtype), vh.astype(compute_dtype),
                   preferred_element_type=jnp.float32)                   # (H, TM, dh)
    attn = o.transpose(1, 0, 2).reshape(TM, D)                           # back to token-major

    attn = linear(attn, wo_ref, bo_ref)                                  # output projection

    # ---- residual + LayerNorm 1  (dropout = identity) ----
    x1 = layer_norm(x_q + attn, g1_ref, b1_ref)

    # ---- position-wise FFN ----
    h1 = jnp.maximum(linear(x1, w1_ref, bf1_ref), 0.0)                   # ReLU
    h2 = linear(h1, w2_ref, bf2_ref)

    # ---- residual + LayerNorm 2  (dropout = identity) ----
    out_ref[...] = layer_norm(x1 + h2, g2_ref, b2_ref)


# ------------------------- wrapper: pallas_call for one layer ---------------------------------
def _pick_token_tile(S):
    # Prefer MXU-friendly tiles; fall back to the full sequence when S is small / indivisible.
    for tm in (256, 128):
        if S % tm == 0:
            return tm
    return S


def _vmem_limit_bytes(tm, S, D, F):
    weight_bytes = (4 * D * D + 2 * D * F + 6 * D + F) * 4
    act_bytes = (tm * D + S * D) * 4
    need = 2 * (weight_bytes + act_bytes) + (8 << 20)      # double-buffering + headroom
    return int(min(max(need, 32 << 20), 64 << 20))         # stay within v7x's 64 MiB VMEM


def encoder_layer(x, p, *, n_head, compute_dtype=jnp.bfloat16):
    B, S, D = x.shape
    F = p["w_ff1"].shape[1]
    assert D % n_head == 0, "d_model must be divisible by n_head"

    tm = _pick_token_tile(S)
    n_t = S // tm

    def full(shape):
        return pl.BlockSpec(shape, lambda b, t: (0,) * len(shape))

    in_specs = [
        pl.BlockSpec((None, S, D), lambda b, t: (b, 0, 0)),    # x (full sequence of batch row b)
        full((D, D)), full((1, D)),                             # Wq, bq
        full((D, D)), full((1, D)),                             # Wk, bk
        full((D, D)), full((1, D)),                             # Wv, bv
        full((D, D)), full((1, D)),                             # Wo, bo
        full((1, D)), full((1, D)),                             # gamma1, beta1
        full((D, F)), full((1, F)),                             # W_ff1, b_ff1
        full((F, D)), full((1, D)),                             # W_ff2, b_ff2
        full((1, D)), full((1, D)),                             # gamma2, beta2
    ]
    out_spec = pl.BlockSpec((None, tm, D), lambda b, t: (b, t, 0))

    kernel = partial(encoder_layer_kernel, n_head=n_head, eps=1e-5,
                     compute_dtype=compute_dtype)

    # Advisory cost hint for the XLA scheduler around the custom call.
    flops = 2 * B * S * (4 * D * D + 2 * D * F) + 4 * B * S * S * D
    transcendentals = B * n_head * S * S + 4 * B * S
    bytes_accessed = 4 * (2 * B * S * D + 4 * D * D + 2 * D * F + 6 * D + F)

    return pl.pallas_call(
        kernel,
        out_shape=jax.ShapeDtypeStruct((B, S, D), jnp.float32),
        grid=(B, n_t),
        in_specs=in_specs,
        out_specs=out_spec,
        compiler_params=pltpu.CompilerParams(
            dimension_semantics=("parallel", "parallel"),
            vmem_limit_bytes=_vmem_limit_bytes(tm, S, D, F)),
        cost_estimate=pl.CostEstimate(flops=flops,
                                      transcendentals=transcendentals,
                                      bytes_accessed=bytes_accessed),
    )(x,
      p["wq"], p["bq"], p["wk"], p["bk"], p["wv"], p["bv"],
      p["wo"], p["bo"],
      p["g1"], p["b1"],
      p["w_ff1"], p["b_ff1"], p["w_ff2"], p["b_ff2"],
      p["g2"], p["b2"])


def encoder_forward(x, layer_params, *, n_head, compute_dtype=jnp.bfloat16):
    for p in layer_params:
        x = encoder_layer(x, p, n_head=n_head, compute_dtype=compute_dtype)
    return x


# ------------------------- deterministic parameter construction -------------------------------
def init_layer_params(key, d_model, ffn_hidden):
    ks = jax.random.split(key, 6)
    s = 0.02
    return dict(
        wq=jax.random.normal(ks[0], (d_model, d_model), jnp.float32) * s,
        bq=jnp.zeros((1, d_model), jnp.float32),
        wk=jax.random.normal(ks[1], (d_model, d_model), jnp.float32) * s,
        bk=jnp.zeros((1, d_model), jnp.float32),
        wv=jax.random.normal(ks[2], (d_model, d_model), jnp.float32) * s,
        bv=jnp.zeros((1, d_model), jnp.float32),
        wo=jax.random.normal(ks[3], (d_model, d_model), jnp.float32) * s,
        bo=jnp.zeros((1, d_model), jnp.float32),
        g1=jnp.ones((1, d_model), jnp.float32),
        b1=jnp.zeros((1, d_model), jnp.float32),
        w_ff1=jax.random.normal(ks[4], (d_model, ffn_hidden), jnp.float32) * s,
        b_ff1=jnp.zeros((1, ffn_hidden), jnp.float32),
        w_ff2=jax.random.normal(ks[5], (ffn_hidden, d_model), jnp.float32) * s,
        b_ff2=jnp.zeros((1, d_model), jnp.float32),
        g2=jnp.ones((1, d_model), jnp.float32),
        b2=jnp.zeros((1, d_model), jnp.float32),
    )


# ------------------------- pure-JAX f32 reference for sanity check ----------------------------
def ref_layer(x, p, n_head):
    S, D = x.shape[1], x.shape[2]
    dh = D // n_head

    def ln(y, g, b):
        mu = jnp.mean(y, -1, keepdims=True)
        var = jnp.mean((y - mu) ** 2, -1, keepdims=True)
        return (y - mu) / jnp.sqrt(var + 1e-5) * g + b

    q = x @ p["wq"] + p["bq"]
    k = x @ p["wk"] + p["bk"]
    v = x @ p["wv"] + p["bv"]
    q = q.reshape(-1, S, n_head, dh).transpose(0, 2, 1, 3)
    k = k.reshape(-1, S, n_head, dh).transpose(0, 2, 1, 3)
    v = v.reshape(-1, S, n_head, dh).transpose(0, 2, 1, 3)
    s = jnp.einsum("bhqd,bhkd->bhqk", q, k) / math.sqrt(dh)
    a = jax.nn.softmax(s, -1)
    o = jnp.einsum("bhqk,bhkd->bhqd", a, v).transpose(0, 2, 1, 3).reshape(-1, S, D)
    o = o @ p["wo"] + p["bo"]
    x1 = ln(x + o, p["g1"], p["b1"])
    h = jnp.maximum(x1 @ p["w_ff1"] + p["b_ff1"], 0.0) @ p["w_ff2"] + p["b_ff2"]
    return ln(x1 + h, p["g2"], p["b2"])


if __name__ == "__main__":
    B, S, D, FFN, N_HEAD, N_LAYERS = 2, 8, 32, 64, 4, 2

    key = jax.random.PRNGKey(0)
    kx, *kls = jax.random.split(key, 1 + N_LAYERS)
    x = jax.random.normal(kx, (B, S, D), jnp.float32)
    layer_params = [init_layer_params(k, D, FFN) for k in kls]

    out = encoder_forward(x, layer_params, n_head=N_HEAD)
    out = jax.block_until_ready(out)

    # sanity check vs pure-JAX f32 reference (kernel matmuls run bf16-in / f32-acc,
    # softmax uses approx reciprocal -> allow a modest tolerance)
    ref = x
    for p in layer_params:
        ref = ref_layer(ref, p, N_HEAD)
    assert out.shape == (B, S, D)
    max_err = float(jnp.max(jnp.abs(out - ref)))
    assert jnp.allclose(out, ref, atol=5e-2, rtol=5e-2), max_err

    print("KERNEL_OK")
</pallas_src>

<mosaic_0001>
module attributes {stable_mosaic.version = 11 : i64} {
  func.func @encoder_layer_kernel(%arg0: i32, %arg1: i32, %arg2: memref<1x8x32xf32, #tpu.memory_space<vmem>>, %arg3: memref<32x32xf32, #tpu.memory_space<vmem>>, %arg4: memref<1x32xf32, #tpu.memory_space<vmem>>, %arg5: memref<32x32xf32, #tpu.memory_space<vmem>>, %arg6: memref<1x32xf32, #tpu.memory_space<vmem>>, %arg7: memref<32x32xf32, #tpu.memory_space<vmem>>, %arg8: memref<1x32xf32, #tpu.memory_space<vmem>>, %arg9: memref<32x32xf32, #tpu.memory_space<vmem>>, %arg10: memref<1x32xf32, #tpu.memory_space<vmem>>, %arg11: memref<1x32xf32, #tpu.memory_space<vmem>>, %arg12: memref<1x32xf32, #tpu.memory_space<vmem>>, %arg13: memref<32x64xf32, #tpu.memory_space<vmem>>, %arg14: memref<1x64xf32, #tpu.memory_space<vmem>>, %arg15: memref<64x32xf32, #tpu.memory_space<vmem>>, %arg16: memref<1x32xf32, #tpu.memory_space<vmem>>, %arg17: memref<1x32xf32, #tpu.memory_space<vmem>>, %arg18: memref<1x32xf32, #tpu.memory_space<vmem>>, %arg19: memref<1x8x32xf32, #tpu.memory_space<vmem>>) attributes {dimension_semantics = [#tpu.dimension_semantics<parallel>, #tpu.dimension_semantics<parallel>], iteration_bounds = array<i64: 2, 1>, scalar_prefetch = 0 : i64, scratch_operands = 0 : i64, tpu.core_type = #tpu.core_type<tc>, window_params = [{transform_indices = @transform_0, window_bounds = array<i64: 1, 8, 32>}, {pipeline_mode = #tpu.pipeline_mode<synchronous>, transform_indices = @transform_1, window_bounds = array<i64: 32, 32>}, {pipeline_mode = #tpu.pipeline_mode<synchronous>, transform_indices = @transform_2, window_bounds = array<i64: 1, 32>}, {pipeline_mode = #tpu.pipeline_mode<synchronous>, transform_indices = @transform_3, window_bounds = array<i64: 32, 32>}, {pipeline_mode = #tpu.pipeline_mode<synchronous>, transform_indices = @transform_4, window_bounds = array<i64: 1, 32>}, {pipeline_mode = #tpu.pipeline_mode<synchronous>, transform_indices = @transform_5, window_bounds = array<i64: 32, 32>}, {pipeline_mode = #tpu.pipeline_mode<synchronous>, transform_indices = @transform_6, window_bounds = array<i64: 1, 32>}, {pipeline_mode = #tpu.pipeline_mode<synchronous>, transform_indices = @transform_7, window_bounds = array<i64: 32, 32>}, {pipeline_mode = #tpu.pipeline_mode<synchronous>, transform_indices = @transform_8, window_bounds = array<i64: 1, 32>}, {pipeline_mode = #tpu.pipeline_mode<synchronous>, transform_indices = @transform_9, window_bounds = array<i64: 1, 32>}, {pipeline_mode = #tpu.pipeline_mode<synchronous>, transform_indices = @transform_10, window_bounds = array<i64: 1, 32>}, {pipeline_mode = #tpu.pipeline_mode<synchronous>, transform_indices = @transform_11, window_bounds = array<i64: 32, 64>}, {pipeline_mode = #tpu.pipeline_mode<synchronous>, transform_indices = @transform_12, window_bounds = array<i64: 1, 64>}, {pipeline_mode = #tpu.pipeline_mode<synchronous>, transform_indices = @transform_13, window_bounds = array<i64: 64, 32>}, {pipeline_mode = #tpu.pipeline_mode<synchronous>, transform_indices = @transform_14, window_bounds = array<i64: 1, 32>}, {pipeline_mode = #tpu.pipeline_mode<synchronous>, transform_indices = @transform_15, window_bounds = array<i64: 1, 32>}, {pipeline_mode = #tpu.pipeline_mode<synchronous>, transform_indices = @transform_16, window_bounds = array<i64: 1, 32>}, {transform_indices = @transform_17, window_bounds = array<i64: 1, 8, 32>}]} {
    %c0 = arith.constant 0 : index
    %c0_0 = arith.constant 0 : index
    %c0_1 = arith.constant 0 : index
    %0 = vector.load %arg2[%c0, %c0_0, %c0_1] : memref<1x8x32xf32, #tpu.memory_space<vmem>>, vector<1x8x32xf32>
    %1 = vector.shape_cast %0 : vector<1x8x32xf32> to vector<8x32xf32>
    %c8_i32 = arith.constant 8 : i32
    %2 = arith.muli %arg1, %c8_i32 : i32
    %3 = tpu.assume_multiple %2, 8 : i32
    %c0_2 = arith.constant 0 : index
    %4 = arith.index_cast %3 : i32 to index
    %c0_3 = arith.constant 0 : index
    %5 = vector.load %arg2[%c0_2, %4, %c0_3] : memref<1x8x32xf32, #tpu.memory_space<vmem>>, vector<1x8x32xf32>
    %6 = vector.shape_cast %5 : vector<1x8x32xf32> to vector<8x32xf32>
    %7 = arith.truncf %6 : vector<8x32xf32> to vector<8x32xbf16>
    %c0_4 = arith.constant 0 : index
    %c0_5 = arith.constant 0 : index
    %8 = vector.load %arg3[%c0_4, %c0_5] : memref<32x32xf32, #tpu.memory_space<vmem>>, vector<32x32xf32>
    %9 = arith.truncf %8 : vector<32x32xf32> to vector<32x32xbf16>
    %cst = arith.constant dense<0.000000e+00> : vector<8x32xf32>
    %10 = tpu.matmul %7, %9, %cst {dimension_numbers = #tpu.dot_dimension_numbers<[1], [0], [0], [1], [0, 0, 1, 1], [], []>} : vector<8x32xbf16>, vector<32x32xbf16>, vector<8x32xf32> -> vector<8x32xf32>
    %c0_6 = arith.constant 0 : index
    %c0_7 = arith.constant 0 : index
    %11 = vector.load %arg4[%c0_6, %c0_7] : memref<1x32xf32, #tpu.memory_space<vmem>>, vector<1x32xf32>
    %12 = vector.broadcast %11 : vector<1x32xf32> to vector<8x32xf32>
    %13 = arith.addf %10, %12 : vector<8x32xf32>
    %14 = arith.truncf %1 : vector<8x32xf32> to vector<8x32xbf16>
    %c0_8 = arith.constant 0 : index
    %c0_9 = arith.constant 0 : index
    %15 = vector.load %arg5[%c0_8, %c0_9] : memref<32x32xf32, #tpu.memory_space<vmem>>, vector<32x32xf32>
    %16 = arith.truncf %15 : vector<32x32xf32> to vector<32x32xbf16>
    %cst_10 = arith.constant dense<0.000000e+00> : vector<8x32xf32>
    %17 = tpu.matmul %14, %16, %cst_10 {dimension_numbers = #tpu.dot_dimension_numbers<[1], [0], [0], [1], [0, 0, 1, 1], [], []>} : vector<8x32xbf16>, vector<32x32xbf16>, vector<8x32xf32> -> vector<8x32xf32>
    %c0_11 = arith.constant 0 : index
    %c0_12 = arith.constant 0 : index
    %18 = vector.load %arg6[%c0_11, %c0_12] : memref<1x32xf32, #tpu.memory_space<vmem>>, vector<1x32xf32>
    %19 = vector.broadcast %18 : vector<1x32xf32> to vector<8x32xf32>
    %20 = arith.addf %17, %19 : vector<8x32xf32>
    %21 = arith.truncf %1 : vector<8x32xf32> to vector<8x32xbf16>
    %c0_13 = arith.constant 0 : index
    %c0_14 = arith.constant 0 : index
    %22 = vector.load %arg7[%c0_13, %c0_14] : memref<32x32xf32, #tpu.memory_space<vmem>>, vector<32x32xf32>
    %23 = arith.truncf %22 : vector<32x32xf32> to vector<32x32xbf16>
    %cst_15 = arith.constant dense<0.000000e+00> : vector<8x32xf32>
    %24 = tpu.matmul %21, %23, %cst_15 {dimension_numbers = #tpu.dot_dimension_numbers<[1], [0], [0], [1], [0, 0, 1, 1], [], []>} : vector<8x32xbf16>, vector<32x32xbf16>, vector<8x32xf32> -> vector<8x32xf32>
    %c0_16 = arith.constant 0 : index
    %c0_17 = arith.constant 0 : index
    %25 = vector.load %arg8[%c0_16, %c0_17] : memref<1x32xf32, #tpu.memory_space<vmem>>, vector<1x32xf32>
    %26 = vector.broadcast %25 : vector<1x32xf32> to vector<8x32xf32>
    %27 = arith.addf %24, %26 : vector<8x32xf32>
    %28 = vector.shape_cast %13 : vector<8x32xf32> to vector<8x4x8xf32>
    %29 = tpu.transpose %28, [1, 0, 2] : vector<8x4x8xf32> -> vector<4x8x8xf32>
    %30 = vector.shape_cast %20 : vector<8x32xf32> to vector<8x4x8xf32>
    %31 = tpu.transpose %30, [1, 0, 2] : vector<8x4x8xf32> -> vector<4x8x8xf32>
    %32 = vector.shape_cast %27 : vector<8x32xf32> to vector<8x4x8xf32>
    %33 = tpu.transpose %32, [1, 0, 2] : vector<8x4x8xf32> -> vector<4x8x8xf32>
    %34 = arith.truncf %29 : vector<4x8x8xf32> to vector<4x8x8xbf16>
    %35 = arith.truncf %31 : vector<4x8x8xf32> to vector<4x8x8xbf16>
    "tpu.trace_start"() <{level = 10 : i32, message = "hqd,hkd->hqk"}> : () -> ()
    %cst_18 = arith.constant dense<0.000000e+00> : vector<4x8x8xf32>
    %36 = tpu.matmul %34, %35, %cst_18 {dimension_numbers = #tpu.dot_dimension_numbers<[2], [2], [1], [1], [0, 0, 0, 1, 1, 1], [0], [0]>} : vector<4x8x8xbf16>, vector<4x8x8xbf16>, vector<4x8x8xf32> -> vector<4x8x8xf32>
    "tpu.trace_stop"() : () -> ()
    %cst_19 = arith.constant 0.353553385 : f32
    %37 = vector.broadcast %cst_19 : f32 to vector<4x8x8xf32>
    %38 = arith.mulf %36, %37 : vector<4x8x8xf32>
    %cst_20 = arith.constant dense<0xFF800000> : vector<4x8xf32>
    %39 = vector.multi_reduction <maximumf>, %38, %cst_20 [2] : vector<4x8x8xf32> to vector<4x8xf32>
    %40 = vector.shape_cast %39 : vector<4x8xf32> to vector<4x8x1xf32>
    %41 = vector.broadcast %40 : vector<4x8x1xf32> to vector<4x8x8xf32>
    %42 = arith.subf %38, %41 : vector<4x8x8xf32>
    %43 = math.exp %42 : vector<4x8x8xf32>
    %cst_21 = arith.constant dense<0.000000e+00> : vector<4x8xf32>
    %44 = vector.multi_reduction <add>, %43, %cst_21 [2] : vector<4x8x8xf32> to vector<4x8xf32>
    %45 = vector.shape_cast %44 : vector<4x8xf32> to vector<4x8x1xf32>
    %46 = tpu.reciprocal %45 {approx = true} : vector<4x8x1xf32> -> vector<4x8x1xf32>
    %47 = vector.broadcast %46 : vector<4x8x1xf32> to vector<4x8x8xf32>
    %48 = arith.mulf %43, %47 : vector<4x8x8xf32>
    %49 = arith.truncf %48 : vector<4x8x8xf32> to vector<4x8x8xbf16>
    %50 = arith.truncf %33 : vector<4x8x8xf32> to vector<4x8x8xbf16>
    "tpu.trace_start"() <{level = 10 : i32, message = "hqk,hkd->hqd"}> : () -> ()
    %cst_22 = arith.constant dense<0.000000e+00> : vector<4x8x8xf32>
    %51 = tpu.matmul %49, %50, %cst_22 {dimension_numbers = #tpu.dot_dimension_numbers<[2], [1], [1], [2], [0, 0, 0, 1, 1, 2], [0], [0]>} : vector<4x8x8xbf16>, vector<4x8x8xbf16>, vector<4x8x8xf32> -> vector<4x8x8xf32>
    "tpu.trace_stop"() : () -> ()
    %52 = tpu.transpose %51, [1, 0, 2] : vector<4x8x8xf32> -> vector<8x4x8xf32>
    %53 = vector.shape_cast %52 : vector<8x4x8xf32> to vector<8x32xf32>
    %54 = arith.truncf %53 : vector<8x32xf32> to vector<8x32xbf16>
    %c0_23 = arith.constant 0 : index
    %c0_24 = arith.constant 0 : index
    %55 = vector.load %arg9[%c0_23, %c0_24] : memref<32x32xf32, #tpu.memory_space<vmem>>, vector<32x32xf32>
    %56 = arith.truncf %55 : vector<32x32xf32> to vector<32x32xbf16>
    %cst_25 = arith.constant dense<0.000000e+00> : vector<8x32xf32>
    %57 = tpu.matmul %54, %56, %cst_25 {dimension_numbers = #tpu.dot_dimension_numbers<[1], [0], [0], [1], [0, 0, 1, 1], [], []>} : vector<8x32xbf16>, vector<32x32xbf16>, vector<8x32xf32> -> vector<8x32xf32>
    %c0_26 = arith.constant 0 : index
    %c0_27 = arith.constant 0 : index
    %58 = vector.load %arg10[%c0_26, %c0_27] : memref<1x32xf32, #tpu.memory_space<vmem>>, vector<1x32xf32>
    %59 = vector.broadcast %58 : vector<1x32xf32> to vector<8x32xf32>
    %60 = arith.addf %57, %59 : vector<8x32xf32>
    %61 = arith.addf %6, %60 : vector<8x32xf32>
    %cst_28 = arith.constant dense<0.000000e+00> : vector<8xf32>
    %62 = vector.multi_reduction <add>, %61, %cst_28 [1] : vector<8x32xf32> to vector<8xf32>
    %63 = vector.shape_cast %62 : vector<8xf32> to vector<8x1xf32>
    %cst_29 = arith.constant 3.200000e+01 : f32
    %64 = vector.broadcast %cst_29 : f32 to vector<8x1xf32>
    %65 = arith.divf %63, %64 : vector<8x1xf32>
    %66 = vector.broadcast %65 : vector<8x1xf32> to vector<8x32xf32>
    %67 = arith.subf %61, %66 : vector<8x32xf32>
    %68 = arith.mulf %67, %67 : vector<8x32xf32>
    %cst_30 = arith.constant dense<0.000000e+00> : vector<8xf32>
    %69 = vector.multi_reduction <add>, %68, %cst_30 [1] : vector<8x32xf32> to vector<8xf32>
    %70 = vector.shape_cast %69 : vector<8xf32> to vector<8x1xf32>
    %cst_31 = arith.constant 3.200000e+01 : f32
    %71 = vector.broadcast %cst_31 : f32 to vector<8x1xf32>
    %72 = arith.divf %70, %71 : vector<8x1xf32>
    %73 = vector.broadcast %65 : vector<8x1xf32> to vector<8x32xf32>
    %74 = arith.subf %61, %73 : vector<8x32xf32>
    %cst_32 = arith.constant 9.99999974E-6 : f32
    %75 = vector.broadcast %cst_32 : f32 to vector<8x1xf32>
    %76 = arith.addf %72, %75 : vector<8x1xf32>
    %77 = math.rsqrt %76 : vector<8x1xf32>
    %78 = vector.broadcast %77 : vector<8x1xf32> to vector<8x32xf32>
    %79 = arith.mulf %74, %78 : vector<8x32xf32>
    %c0_33 = arith.constant 0 : index
    %c0_34 = arith.constant 0 : index
    %80 = vector.load %arg11[%c0_33, %c0_34] : memref<1x32xf32, #tpu.memory_space<vmem>>, vector<1x32xf32>
    %81 = vector.broadcast %80 : vector<1x32xf32> to vector<8x32xf32>
    %82 = arith.mulf %79, %81 : vector<8x32xf32>
    %c0_35 = arith.constant 0 : index
    %c0_36 = arith.constant 0 : index
    %83 = vector.load %arg12[%c0_35, %c0_36] : memref<1x32xf32, #tpu.memory_space<vmem>>, vector<1x32xf32>
    %84 = vector.broadcast %83 : vector<1x32xf32> to vector<8x32xf32>
    %85 = arith.addf %82, %84 : vector<8x32xf32>
    %86 = arith.truncf %85 : vector<8x32xf32> to vector<8x32xbf16>
    %c0_37 = arith.constant 0 : index
    %c0_38 = arith.constant 0 : index
    %87 = vector.load %arg13[%c0_37, %c0_38] : memref<32x64xf32, #tpu.memory_space<vmem>>, vector<32x64xf32>
    %88 = arith.truncf %87 : vector<32x64xf32> to vector<32x64xbf16>
    %cst_39 = arith.constant dense<0.000000e+00> : vector<8x64xf32>
    %89 = tpu.matmul %86, %88, %cst_39 {dimension_numbers = #tpu.dot_dimension_numbers<[1], [0], [0], [1], [0, 0, 1, 1], [], []>} : vector<8x32xbf16>, vector<32x64xbf16>, vector<8x64xf32> -> vector<8x64xf32>
    %c0_40 = arith.constant 0 : index
    %c0_41 = arith.constant 0 : index
    %90 = vector.load %arg14[%c0_40, %c0_41] : memref<1x64xf32, #tpu.memory_space<vmem>>, vector<1x64xf32>
    %91 = vector.broadcast %90 : vector<1x64xf32> to vector<8x64xf32>
    %92 = arith.addf %89, %91 : vector<8x64xf32>
    %cst_42 = arith.constant 0.000000e+00 : f32
    %93 = vector.broadcast %cst_42 : f32 to vector<8x64xf32>
    %94 = arith.maximumf %92, %93 : vector<8x64xf32>
    %95 = arith.truncf %94 : vector<8x64xf32> to vector<8x64xbf16>
    %c0_43 = arith.constant 0 : index
    %c0_44 = arith.constant 0 : index
    %96 = vector.load %arg15[%c0_43, %c0_44] : memref<64x32xf32, #tpu.memory_space<vmem>>, vector<64x32xf32>
    %97 = arith.truncf %96 : vector<64x32xf32> to vector<64x32xbf16>
    %cst_45 = arith.constant dense<0.000000e+00> : vector<8x32xf32>
    %98 = tpu.matmul %95, %97, %cst_45 {dimension_numbers = #tpu.dot_dimension_numbers<[1], [0], [0], [1], [0, 0, 1, 1], [], []>} : vector<8x64xbf16>, vector<64x32xbf16>, vector<8x32xf32> -> vector<8x32xf32>
    %c0_46 = arith.constant 0 : index
    %c0_47 = arith.constant 0 : index
    %99 = vector.load %arg16[%c0_46, %c0_47] : memref<1x32xf32, #tpu.memory_space<vmem>>, vector<1x32xf32>
    %100 = vector.broadcast %99 : vector<1x32xf32> to vector<8x32xf32>
    %101 = arith.addf %98, %100 : vector<8x32xf32>
    %102 = arith.addf %85, %101 : vector<8x32xf32>
    %cst_48 = arith.constant dense<0.000000e+00> : vector<8xf32>
    %103 = vector.multi_reduction <add>, %102, %cst_48 [1] : vector<8x32xf32> to vector<8xf32>
    %104 = vector.shape_cast %103 : vector<8xf32> to vector<8x1xf32>
    %cst_49 = arith.constant 3.200000e+01 : f32
    %105 = vector.broadcast %cst_49 : f32 to vector<8x1xf32>
    %106 = arith.divf %104, %105 : vector<8x1xf32>
    %107 = vector.broadcast %106 : vector<8x1xf32> to vector<8x32xf32>
    %108 = arith.subf %102, %107 : vector<8x32xf32>
    %109 = arith.mulf %108, %108 : vector<8x32xf32>
    %cst_50 = arith.constant dense<0.000000e+00> : vector<8xf32>
    %110 = vector.multi_reduction <add>, %109, %cst_50 [1] : vector<8x32xf32> to vector<8xf32>
    %111 = vector.shape_cast %110 : vector<8xf32> to vector<8x1xf32>
    %cst_51 = arith.constant 3.200000e+01 : f32
    %112 = vector.broadcast %cst_51 : f32 to vector<8x1xf32>
    %113 = arith.divf %111, %112 : vector<8x1xf32>
    %114 = vector.broadcast %106 : vector<8x1xf32> to vector<8x32xf32>
    %115 = arith.subf %102, %114 : vector<8x32xf32>
    %cst_52 = arith.constant 9.99999974E-6 : f32
    %116 = vector.broadcast %cst_52 : f32 to vector<8x1xf32>
    %117 = arith.addf %113, %116 : vector<8x1xf32>
    %118 = math.rsqrt %117 : vector<8x1xf32>
    %119 = vector.broadcast %118 : vector<8x1xf32> to vector<8x32xf32>
    %120 = arith.mulf %115, %119 : vector<8x32xf32>
    %c0_53 = arith.constant 0 : index
    %c0_54 = arith.constant 0 : index
    %121 = vector.load %arg17[%c0_53, %c0_54] : memref<1x32xf32, #tpu.memory_space<vmem>>, vector<1x32xf32>
    %122 = vector.broadcast %121 : vector<1x32xf32> to vector<8x32xf32>
    %123 = arith.mulf %120, %122 : vector<8x32xf32>
    %c0_55 = arith.constant 0 : index
    %c0_56 = arith.constant 0 : index
    %124 = vector.load %arg18[%c0_55, %c0_56] : memref<1x32xf32, #tpu.memory_space<vmem>>, vector<1x32xf32>
    %125 = vector.broadcast %124 : vector<1x32xf32> to vector<8x32xf32>
    %126 = arith.addf %123, %125 : vector<8x32xf32>
    %c0_57 = arith.constant 0 : index
    %c0_58 = arith.constant 0 : index
    %c0_59 = arith.constant 0 : index
    %127 = vector.load %arg19[%c0_57, %c0_58, %c0_59] : memref<1x8x32xf32, #tpu.memory_space<vmem>>, vector<1x8x32xf32>
    %128 = vector.shape_cast %127 : vector<1x8x32xf32> to vector<8x32xf32>
    %129 = vector.shape_cast %126 : vector<8x32xf32> to vector<1x8x32xf32>
    tpu.vector_store %arg19[%c0_57, %c0_58, %c0_59], %129 {strides = array<i32>} : memref<1x8x32xf32, #tpu.memory_space<vmem>>, vector<1x8x32xf32>,
    return
  }
  func.func @transform_0(%arg0: i32, %arg1: i32) -> (i32, i32, i32) {
    %c0_i32 = arith.constant 0 : i32
    %c0_i32_0 = arith.constant 0 : i32
    %c0_i32_1 = arith.constant 0 : i32
    return %arg0, %c0_i32, %c0_i32_0 : i32, i32, i32
  }
  func.func @transform_1(%arg0: i32, %arg1: i32) -> (i32, i32) {
    %c0_i32 = arith.constant 0 : i32
    %c0_i32_0 = arith.constant 0 : i32
    %c0_i32_1 = arith.constant 0 : i32
    return %c0_i32, %c0_i32_0 : i32, i32
  }
  func.func @transform_2(%arg0: i32, %arg1: i32) -> (i32, i32) {
    %c0_i32 = arith.constant 0 : i32
    %c0_i32_0 = arith.constant 0 : i32
    %c0_i32_1 = arith.constant 0 : i32
    return %c0_i32, %c0_i32_0 : i32, i32
  }
  func.func @transform_3(%arg0: i32, %arg1: i32) -> (i32, i32) {
    %c0_i32 = arith.constant 0 : i32
    %c0_i32_0 = arith.constant 0 : i32
    %c0_i32_1 = arith.constant 0 : i32
    return %c0_i32, %c0_i32_0 : i32, i32
  }
  func.func @transform_4(%arg0: i32, %arg1: i32) -> (i32, i32) {
    %c0_i32 = arith.constant 0 : i32
    %c0_i32_0 = arith.constant 0 : i32
    %c0_i32_1 = arith.constant 0 : i32
    return %c0_i32, %c0_i32_0 : i32, i32
  }
  func.func @transform_5(%arg0: i32, %arg1: i32) -> (i32, i32) {
    %c0_i32 = arith.constant 0 : i32
    %c0_i32_0 = arith.constant 0 : i32
    %c0_i32_1 = arith.constant 0 : i32
    return %c0_i32, %c0_i32_0 : i32, i32
  }
  func.func @transform_6(%arg0: i32, %arg1: i32) -> (i32, i32) {
    %c0_i32 = arith.constant 0 : i32
    %c0_i32_0 = arith.constant 0 : i32
    %c0_i32_1 = arith.constant 0 : i32
    return %c0_i32, %c0_i32_0 : i32, i32
  }
  func.func @transform_7(%arg0: i32, %arg1: i32) -> (i32, i32) {
    %c0_i32 = arith.constant 0 : i32
    %c0_i32_0 = arith.constant 0 : i32
    %c0_i32_1 = arith.constant 0 : i32
    return %c0_i32, %c0_i32_0 : i32, i32
  }
  func.func @transform_8(%arg0: i32, %arg1: i32) -> (i32, i32) {
    %c0_i32 = arith.constant 0 : i32
    %c0_i32_0 = arith.constant 0 : i32
    %c0_i32_1 = arith.constant 0 : i32
    return %c0_i32, %c0_i32_0 : i32, i32
  }
  func.func @transform_9(%arg0: i32, %arg1: i32) -> (i32, i32) {
    %c0_i32 = arith.constant 0 : i32
    %c0_i32_0 = arith.constant 0 : i32
    %c0_i32_1 = arith.constant 0 : i32
    return %c0_i32, %c0_i32_0 : i32, i32
  }
  func.func @transform_10(%arg0: i32, %arg1: i32) -> (i32, i32) {
    %c0_i32 = arith.constant 0 : i32
    %c0_i32_0 = arith.constant 0 : i32
    %c0_i32_1 = arith.constant 0 : i32
    return %c0_i32, %c0_i32_0 : i32, i32
  }
  func.func @transform_11(%arg0: i32, %arg1: i32) -> (i32, i32) {
    %c0_i32 = arith.constant 0 : i32
    %c0_i32_0 = arith.constant 0 : i32
    %c0_i32_1 = arith.constant 0 : i32
    return %c0_i32, %c0_i32_0 : i32, i32
  }
  func.func @transform_12(%arg0: i32, %arg1: i32) -> (i32, i32) {
    %c0_i32 = arith.constant 0 : i32
    %c0_i32_0 = arith.constant 0 : i32
    %c0_i32_1 = arith.constant 0 : i32
    return %c0_i32, %c0_i32_0 : i32, i32
  }
  func.func @transform_13(%arg0: i32, %arg1: i32) -> (i32, i32) {
    %c0_i32 = arith.constant 0 : i32
    %c0_i32_0 = arith.constant 0 : i32
    %c0_i32_1 = arith.constant 0 : i32
    return %c0_i32, %c0_i32_0 : i32, i32
  }
  func.func @transform_14(%arg0: i32, %arg1: i32) -> (i32, i32) {
    %c0_i32 = arith.constant 0 : i32
    %c0_i32_0 = arith.constant 0 : i32
    %c0_i32_1 = arith.constant 0 : i32
    return %c0_i32, %c0_i32_0 : i32, i32
  }
  func.func @transform_15(%arg0: i32, %arg1: i32) -> (i32, i32) {
    %c0_i32 = arith.constant 0 : i32
    %c0_i32_0 = arith.constant 0 : i32
    %c0_i32_1 = arith.constant 0 : i32
    return %c0_i32, %c0_i32_0 : i32, i32
  }
  func.func @transform_16(%arg0: i32, %arg1: i32) -> (i32, i32) {
    %c0_i32 = arith.constant 0 : i32
    %c0_i32_0 = arith.constant 0 : i32
    %c0_i32_1 = arith.constant 0 : i32
    return %c0_i32, %c0_i32_0 : i32, i32
  }
  func.func @transform_17(%arg0: i32, %arg1: i32) -> (i32, i32, i32) {
    %c0_i32 = arith.constant 0 : i32
    %c0_i32_0 = arith.constant 0 : i32
    return %arg0, %arg1, %c0_i32 : i32, i32, i32
  }
}

</mosaic_0001>

<llo_original>
// kernel: tpu_custom_call.1
$region0: #{tpu_custom_call.1}
  #allocation0 [shape = 'u32[]', space=smem, size = 0x4, offset = 0x4, fixed_abs, tag = 'smem constant byte address 0x4 - core index']
  #allocation1 [shape = 'u32[144,128]{1,0:T(1,128)}', space=vmem, size = 0x12000, scoped, tag = 'internal scratch']
  %s0 = inlined_call_operand.hbm [shape: f32[2,8,32], index: 0, kind: input, shape index: {}]
  %s1 = inlined_call_operand.vmem [shape: f32[32,32], index: 1, kind: input, shape index: {}]
  %s2 = inlined_call_operand.vmem [shape: f32[1,32], index: 2, kind: input, shape index: {}]
  %s3 = inlined_call_operand.vmem [shape: f32[32,32], index: 3, kind: input, shape index: {}]
  %s4 = inlined_call_operand.vmem [shape: f32[1,32], index: 4, kind: input, shape index: {}]
  %s5 = inlined_call_operand.vmem [shape: f32[32,32], index: 5, kind: input, shape index: {}]
  %s6 = inlined_call_operand.vmem [shape: f32[1,32], index: 6, kind: input, shape index: {}]
  %s7 = inlined_call_operand.hbm [shape: f32[32,32], index: 7, kind: input, shape index: {}]
  %s8 = inlined_call_operand.vmem [shape: f32[1,32], index: 8, kind: input, shape index: {}]
  %s9 = inlined_call_operand.vmem [shape: f32[1,32], index: 9, kind: input, shape index: {}]
  %s10 = inlined_call_operand.vmem [shape: f32[1,32], index: 10, kind: input, shape index: {}]
  %s11 = inlined_call_operand.hbm [shape: f32[32,64], index: 11, kind: input, shape index: {}]
  %s12 = inlined_call_operand.vmem [shape: f32[1,64], index: 12, kind: input, shape index: {}]
  %s13 = inlined_call_operand.vmem [shape: f32[64,32], index: 13, kind: input, shape index: {}]
  %s14 = inlined_call_operand.vmem [shape: f32[1,32], index: 14, kind: input, shape index: {}]
  %s15 = inlined_call_operand.vmem [shape: f32[1,32], index: 15, kind: input, shape index: {}]
  %s16 = inlined_call_operand.vmem [shape: f32[1,32], index: 16, kind: input, shape index: {}]
  %s17 = inlined_call_operand.hbm [shape: f32[2,8,32], index: 17, kind: output, shape index: {}]
  %s18 = sld [smem:[#allocation0]]
  $region113: #{tpu_custom_call.1} parent=0
    _
  %s20 = ssub.s32 1, %s18
  %s21 = scalar_select 0, %s20, %s18
  $region1: #{tpu_custom_call.1} parent=0
    #allocation2 [shape = 'u8[8192]{0}', space=vmem, size = 0x2000, scoped, tag = 'input window, operand 0']
    #allocation3 [shape = 's32[2]{0}', space=sflag, size = 0x8, scoped, tag = 'scoped memory for tpu_custom_call.1']
    #allocation4 [shape = 's32[2]{0}', space=sflag, size = 0x8, scoped, tag = 'scoped memory for tpu_custom_call.1']
    #allocation5 [shape = 'u8[16384]{0}', space=vmem, size = 0x4000, scoped, tag = 'input window, operand 7, single buffered']
    #allocation6 [shape = 's32[1]{0}', space=sflag, size = 0x4, scoped, tag = 'scoped memory for tpu_custom_call.1']
    #allocation7 [shape = 'u8[16384]{0}', space=vmem, size = 0x4000, scoped, tag = 'input window, operand 11, single buffered']
    #allocation8 [shape = 'u8[8192]{0}', space=vmem, size = 0x2000, scoped, tag = 'output window, operand 0']
    %22 = vsyncpa [#allocation3], 0
    %s23 = scalar_lea.sflag [#allocation3], 1
    %24 = vsyncpa %s23, 0
    %25 = vsyncpa [#allocation6], 0
    %26 = vsyncpa [#allocation4], 0
    %s27 = scalar_lea.sflag [#allocation4], 1
    %28 = vsyncpa %s27, 0
    loop: start=0, step=1, limit=4
    $region2: #{tpu_custom_call.1} parent=1 // loop_pre_header
      _
    $region3: #{tpu_custom_call.1} parent=1 // loop_header
      %s30 = sphi 0, %s34
      %p31 = scmp.ge.s32.totalorder %s30, 4
      %s37 = sphi 0, %s49
      %s38 = sphi 0, %s45
      %s39 = sphi 0, %s37
      %s40 = sphi 0, %s38
      %s41 = sphi 0, %s39
      %s42 = sphi 0, %s40
      %s52 = sphi 0, %s54
      %s55 = sphi 0, %s52
      %s56 = sphi 0, %s55
      %s72 = sphi 0, %s56
      %s76 = sphi 0, %s76
      %s78 = sphi 0, %s76
      %s79 = sphi 0, %s78
      %s93 = sphi 0, %s79
      %s97 = sphi 0, %s97
      %s99 = sphi 0, %s97
      %s100 = sphi 0, %s99
      %s114 = sphi 0, %s100
      %s118 = sphi 0, %s118
      %s120 = sphi 0, %s118
      %s121 = sphi 0, %s120
      %s135 = sphi 0, %s121
      %s139 = sphi 0, %s139
      %s141 = sphi 0, %s139
      %s142 = sphi 0, %s141
      %s156 = sphi 0, %s142
      %s160 = sphi 0, %s160
      %s162 = sphi 0, %s160
      %s163 = sphi 0, %s162
      %s177 = sphi 0, %s163
      %s181 = sphi 0, %s181
      %s183 = sphi 0, %s181
      %s184 = sphi 0, %s183
      %s198 = sphi 0, %s184
      %s202 = sphi 0, %s202
      %s204 = sphi 0, %s202
      %s205 = sphi 0, %s204
      %s219 = sphi 0, %s205
      %s223 = sphi 0, %s223
      %s225 = sphi 0, %s223
      %s226 = sphi 0, %s225
      %s240 = sphi 0, %s226
      %s244 = sphi 0, %s244
      %s246 = sphi 0, %s244
      %s247 = sphi 0, %s246
      %s261 = sphi 0, %s247
      %s265 = sphi 0, %s265
      %s267 = sphi 0, %s265
      %s268 = sphi 0, %s267
      %s282 = sphi 0, %s268
      %s286 = sphi 0, %s286
      %s288 = sphi 0, %s286
      %s289 = sphi 0, %s288
      %s303 = sphi 0, %s289
      %s307 = sphi 0, %s307
      %s309 = sphi 0, %s307
      %s310 = sphi 0, %s309
      %s324 = sphi 0, %s310
      %s328 = sphi 0, %s328
      %s330 = sphi 0, %s328
      %s331 = sphi 0, %s330
      %s345 = sphi 0, %s331
      %s349 = sphi 0, %s349
      %s351 = sphi 0, %s349
      %s352 = sphi 0, %s351
      %s366 = sphi 0, %s352
      %s370 = sphi 0, %s370
      %s372 = sphi 0, %s370
      %s373 = sphi 0, %s372
      %s387 = sphi 0, %s373
      %s391 = sphi 0, %s391
      %s393 = sphi 0, %s391
      %s394 = sphi 0, %s393
      %s408 = sphi 0, %s394
      %s416 = sphi 0, %s418
      %s419 = sphi 0, %s416
      %s420 = sphi 0, %s419
      %s436 = sphi 0, %s420
    $region4: #{tpu_custom_call.1} parent=1 // loop_header_branch
      %33 = sbr.rel (%p31) target = $region8
    $region5: #{tpu_custom_call.1} parent=1 // loop_body
      %s35 = ssub.s32 %s30, 1
      %s36 = ssub.s32 %s30, 2
      %s43 = sadd.s32 1, %s38
      %p44 = scmp.ge.s32.totalorder %s43, 1
      %s45 = scalar_select %p44, 0, %s43
      %s46 = sadd.s32 1, %s37
      %s47 = scalar_select %p44, %s46, %s37
      %p48 = scmp.ge.s32.totalorder %s47, 2
      %s49 = scalar_select %p48, 0, %s47
      %s50 = ssub.s32 %s37, %s49
      %p51 = scmp.eq.s32.totalorder %s50, 0
      %s53 = sadd.s32 %s52, 1
      %s54 = scalar_select %p51, %s52, %s53
      %p57 = pneg %p51
      %p58 = scmp.eq.s32.totalorder %s30, 1
      %p59 = por %p57, %p58
      %p60 = scmp.ne.s32.totalorder %s52, %s55
      %p61 = scmp.eq.s32.totalorder %s30, 0
      %p62 = por %p60, %p61
      %p63 = scmp.ne.s32.totalorder %s52, %s55
      %p64 = scmp.eq.s32.totalorder %s35, 1
      %p65 = por %p63, %p64
      %p66 = scmp.ne.s32.totalorder %s55, %s56
      %p67 = scmp.eq.s32.totalorder %s35, 0
      %p68 = por %p66, %p67
      %p69 = scmp.ne.s32.totalorder %s55, %s56
      %p70 = scmp.eq.s32.totalorder %s36, 1
      %p71 = por %p69, %p70
      %p73 = scmp.ne.s32.totalorder %s56, %s72
      %p74 = scmp.eq.s32.totalorder %s36, 0
      %p75 = por %p73, %p74
      %s77 = sadd.s32 %s76, 1
      %p80 = scmp.eq.s32.totalorder %s30, 1
      %p81 = scmp.ne.s32.totalorder %s76, %s78
      %p82 = scmp.eq.s32.totalorder %s30, 0
      %p83 = por %p81, %p82
      %p84 = scmp.ne.s32.totalorder %s76, %s78
      %p85 = scmp.eq.s32.totalorder %s35, 1
      %p86 = por %p84, %p85
      %p87 = scmp.ne.s32.totalorder %s78, %s79
      %p88 = scmp.eq.s32.totalorder %s35, 0
      %p89 = por %p87, %p88
      %p90 = scmp.ne.s32.totalorder %s78, %s79
      %p91 = scmp.eq.s32.totalorder %s36, 1
      %p92 = por %p90, %p91
      %p94 = scmp.ne.s32.totalorder %s79, %s93
      %p95 = scmp.eq.s32.totalorder %s36, 0
      %p96 = por %p94, %p95
      %s98 = sadd.s32 %s97, 1
      %p101 = scmp.eq.s32.totalorder %s30, 1
      %p102 = scmp.ne.s32.totalorder %s97, %s99
      %p103 = scmp.eq.s32.totalorder %s30, 0
      %p104 = por %p102, %p103
      %p105 = scmp.ne.s32.totalorder %s97, %s99
      %p106 = scmp.eq.s32.totalorder %s35, 1
      %p107 = por %p105, %p106
      %p108 = scmp.ne.s32.totalorder %s99, %s100
      %p109 = scmp.eq.s32.totalorder %s35, 0
      %p110 = por %p108, %p109
      %p111 = scmp.ne.s32.totalorder %s99, %s100
      %p112 = scmp.eq.s32.totalorder %s36, 1
      %p113 = por %p111, %p112
      %p115 = scmp.ne.s32.totalorder %s100, %s114
      %p116 = scmp.eq.s32.totalorder %s36, 0
      %p117 = por %p115, %p116
      %s119 = sadd.s32 %s118, 1
      %p122 = scmp.eq.s32.totalorder %s30, 1
      %p123 = scmp.ne.s32.totalorder %s118, %s120
      %p124 = scmp.eq.s32.totalorder %s30, 0
      %p125 = por %p123, %p124
      %p126 = scmp.ne.s32.totalorder %s118, %s120
      %p127 = scmp.eq.s32.totalorder %s35, 1
      %p128 = por %p126, %p127
      %p129 = scmp.ne.s32.totalorder %s120, %s121
      %p130 = scmp.eq.s32.totalorder %s35, 0
      %p131 = por %p129, %p130
      %p132 = scmp.ne.s32.totalorder %s120, %s121
      %p133 = scmp.eq.s32.totalorder %s36, 1
      %p134 = por %p132, %p133
      %p136 = scmp.ne.s32.totalorder %s121, %s135
      %p137 = scmp.eq.s32.totalorder %s36, 0
      %p138 = por %p136, %p137
      %s140 = sadd.s32 %s139, 1
      %p143 = scmp.eq.s32.totalorder %s30, 1
      %p144 = scmp.ne.s32.totalorder %s139, %s141
      %p145 = scmp.eq.s32.totalorder %s30, 0
      %p146 = por %p144, %p145
      %p147 = scmp.ne.s32.totalorder %s139, %s141
      %p148 = scmp.eq.s32.totalorder %s35, 1
      %p149 = por %p147, %p148
      %p150 = scmp.ne.s32.totalorder %s141, %s142
      %p151 = scmp.eq.s32.totalorder %s35, 0
      %p152 = por %p150, %p151
      %p153 = scmp.ne.s32.totalorder %s141, %s142
      %p154 = scmp.eq.s32.totalorder %s36, 1
      %p155 = por %p153, %p154
      %p157 = scmp.ne.s32.totalorder %s142, %s156
      %p158 = scmp.eq.s32.totalorder %s36, 0
      %p159 = por %p157, %p158
      %s161 = sadd.s32 %s160, 1
      %p164 = scmp.eq.s32.totalorder %s30, 1
      %p165 = scmp.ne.s32.totalorder %s160, %s162
      %p166 = scmp.eq.s32.totalorder %s30, 0
      %p167 = por %p165, %p166
      %p168 = scmp.ne.s32.totalorder %s160, %s162
      %p169 = scmp.eq.s32.totalorder %s35, 1
      %p170 = por %p168, %p169
      %p171 = scmp.ne.s32.totalorder %s162, %s163
      %p172 = scmp.eq.s32.totalorder %s35, 0
      %p173 = por %p171, %p172
      %p174 = scmp.ne.s32.totalorder %s162, %s163
      %p175 = scmp.eq.s32.totalorder %s36, 1
      %p176 = por %p174, %p175
      %p178 = scmp.ne.s32.totalorder %s163, %s177
      %p179 = scmp.eq.s32.totalorder %s36, 0
      %p180 = por %p178, %p179
      %s182 = sadd.s32 %s181, 1
      %p185 = scmp.eq.s32.totalorder %s30, 1
      %p186 = scmp.ne.s32.totalorder %s181, %s183
      %p187 = scmp.eq.s32.totalorder %s30, 0
      %p188 = por %p186, %p187
      %p189 = scmp.ne.s32.totalorder %s181, %s183
      %p190 = scmp.eq.s32.totalorder %s35, 1
      %p191 = por %p189, %p190
      %p192 = scmp.ne.s32.totalorder %s183, %s184
      %p193 = scmp.eq.s32.totalorder %s35, 0
      %p194 = por %p192, %p193
      %p195 = scmp.ne.s32.totalorder %s183, %s184
      %p196 = scmp.eq.s32.totalorder %s36, 1
      %p197 = por %p195, %p196
      %p199 = scmp.ne.s32.totalorder %s184, %s198
      %p200 = scmp.eq.s32.totalorder %s36, 0
      %p201 = por %p199, %p200
      %s203 = sadd.s32 %s202, 1
      %p206 = scmp.eq.s32.totalorder %s30, 1
      %p207 = scmp.ne.s32.totalorder %s202, %s204
      %p208 = scmp.eq.s32.totalorder %s30, 0
      %p209 = por %p207, %p208
      %p210 = scmp.ne.s32.totalorder %s202, %s204
      %p211 = scmp.eq.s32.totalorder %s35, 1
      %p212 = por %p210, %p211
      %p213 = scmp.ne.s32.totalorder %s204, %s205
      %p214 = scmp.eq.s32.totalorder %s35, 0
      %p215 = por %p213, %p214
      %p216 = scmp.ne.s32.totalorder %s204, %s205
      %p217 = scmp.eq.s32.totalorder %s36, 1
      %p218 = por %p216, %p217
      %p220 = scmp.ne.s32.totalorder %s205, %s219
      %p221 = scmp.eq.s32.totalorder %s36, 0
      %p222 = por %p220, %p221
      %s224 = sadd.s32 %s223, 1
      %p227 = scmp.eq.s32.totalorder %s30, 1
      %p228 = scmp.ne.s32.totalorder %s223, %s225
      %p229 = scmp.eq.s32.totalorder %s30, 0
      %p230 = por %p228, %p229
      %p231 = scmp.ne.s32.totalorder %s223, %s225
      %p232 = scmp.eq.s32.totalorder %s35, 1
      %p233 = por %p231, %p232
      %p234 = scmp.ne.s32.totalorder %s225, %s226
      %p235 = scmp.eq.s32.totalorder %s35, 0
      %p236 = por %p234, %p235
      %p237 = scmp.ne.s32.totalorder %s225, %s226
      %p238 = scmp.eq.s32.totalorder %s36, 1
      %p239 = por %p237, %p238
      %p241 = scmp.ne.s32.totalorder %s226, %s240
      %p242 = scmp.eq.s32.totalorder %s36, 0
      %p243 = por %p241, %p242
      %s245 = sadd.s32 %s244, 1
      %p248 = scmp.eq.s32.totalorder %s30, 1
      %p249 = scmp.ne.s32.totalorder %s244, %s246
      %p250 = scmp.eq.s32.totalorder %s30, 0
      %p251 = por %p249, %p250
      %p252 = scmp.ne.s32.totalorder %s244, %s246
      %p253 = scmp.eq.s32.totalorder %s35, 1
      %p254 = por %p252, %p253
      %p255 = scmp.ne.s32.totalorder %s246, %s247
      %p256 = scmp.eq.s32.totalorder %s35, 0
      %p257 = por %p255, %p256
      %p258 = scmp.ne.s32.totalorder %s246, %s247
      %p259 = scmp.eq.s32.totalorder %s36, 1
      %p260 = por %p258, %p259
      %p262 = scmp.ne.s32.totalorder %s247, %s261
      %p263 = scmp.eq.s32.totalorder %s36, 0
      %p264 = por %p262, %p263
      %s266 = sadd.s32 %s265, 1
      %p269 = scmp.eq.s32.totalorder %s30, 1
      %p270 = scmp.ne.s32.totalorder %s265, %s267
      %p271 = scmp.eq.s32.totalorder %s30, 0
      %p272 = por %p270, %p271
      %p273 = scmp.ne.s32.totalorder %s265, %s267
      %p274 = scmp.eq.s32.totalorder %s35, 1
      %p275 = por %p273, %p274
      %p276 = scmp.ne.s32.totalorder %s267, %s268
      %p277 = scmp.eq.s32.totalorder %s35, 0
      %p278 = por %p276, %p277
      %p279 = scmp.ne.s32.totalorder %s267, %s268
      %p280 = scmp.eq.s32.totalorder %s36, 1
      %p281 = por %p279, %p280
      %p283 = scmp.ne.s32.totalorder %s268, %s282
      %p284 = scmp.eq.s32.totalorder %s36, 0
      %p285 = por %p283, %p284
      %s287 = sadd.s32 %s286, 1
      %p290 = scmp.eq.s32.totalorder %s30, 1
      %p291 = scmp.ne.s32.totalorder %s286, %s288
      %p292 = scmp.eq.s32.totalorder %s30, 0
      %p293 = por %p291, %p292
      %p294 = scmp.ne.s32.totalorder %s286, %s288
      %p295 = scmp.eq.s32.totalorder %s35, 1
      %p296 = por %p294, %p295
      %p297 = scmp.ne.s32.totalorder %s288, %s289
      %p298 = scmp.eq.s32.totalorder %s35, 0
      %p299 = por %p297, %p298
      %p300 = scmp.ne.s32.totalorder %s288, %s289
      %p301 = scmp.eq.s32.totalorder %s36, 1
      %p302 = por %p300, %p301
      %p304 = scmp.ne.s32.totalorder %s289, %s303
      %p305 = scmp.eq.s32.totalorder %s36, 0
      %p306 = por %p304, %p305
      %s308 = sadd.s32 %s307, 1
      %p311 = scmp.eq.s32.totalorder %s30, 1
      %p312 = scmp.ne.s32.totalorder %s307, %s309
      %p313 = scmp.eq.s32.totalorder %s30, 0
      %p314 = por %p312, %p313
      %p315 = scmp.ne.s32.totalorder %s307, %s309
      %p316 = scmp.eq.s32.totalorder %s35, 1
      %p317 = por %p315, %p316
      %p318 = scmp.ne.s32.totalorder %s309, %s310
      %p319 = scmp.eq.s32.totalorder %s35, 0
      %p320 = por %p318, %p319
      %p321 = scmp.ne.s32.totalorder %s309, %s310
      %p322 = scmp.eq.s32.totalorder %s36, 1
      %p323 = por %p321, %p322
      %p325 = scmp.ne.s32.totalorder %s310, %s324
      %p326 = scmp.eq.s32.totalorder %s36, 0
      %p327 = por %p325, %p326
      %s329 = sadd.s32 %s328, 1
      %p332 = scmp.eq.s32.totalorder %s30, 1
      %p333 = scmp.ne.s32.totalorder %s328, %s330
      %p334 = scmp.eq.s32.totalorder %s30, 0
      %p335 = por %p333, %p334
      %p336 = scmp.ne.s32.totalorder %s328, %s330
      %p337 = scmp.eq.s32.totalorder %s35, 1
      %p338 = por %p336, %p337
      %p339 = scmp.ne.s32.totalorder %s330, %s331
      %p340 = scmp.eq.s32.totalorder %s35, 0
      %p341 = por %p339, %p340
      %p342 = scmp.ne.s32.totalorder %s330, %s331
      %p343 = scmp.eq.s32.totalorder %s36, 1
      %p344 = por %p342, %p343
      %p346 = scmp.ne.s32.totalorder %s331, %s345
      %p347 = scmp.eq.s32.totalorder %s36, 0
      %p348 = por %p346, %p347
      %s350 = sadd.s32 %s349, 1
      %p353 = scmp.eq.s32.totalorder %s30, 1
      %p354 = scmp.ne.s32.totalorder %s349, %s351
      %p355 = scmp.eq.s32.totalorder %s30, 0
      %p356 = por %p354, %p355
      %p357 = scmp.ne.s32.totalorder %s349, %s351
      %p358 = scmp.eq.s32.totalorder %s35, 1
      %p359 = por %p357, %p358
      %p360 = scmp.ne.s32.totalorder %s351, %s352
      %p361 = scmp.eq.s32.totalorder %s35, 0
      %p362 = por %p360, %p361
      %p363 = scmp.ne.s32.totalorder %s351, %s352
      %p364 = scmp.eq.s32.totalorder %s36, 1
      %p365 = por %p363, %p364
      %p367 = scmp.ne.s32.totalorder %s352, %s366
      %p368 = scmp.eq.s32.totalorder %s36, 0
      %p369 = por %p367, %p368
      %s371 = sadd.s32 %s370, 1
      %p374 = scmp.eq.s32.totalorder %s30, 1
      %p375 = scmp.ne.s32.totalorder %s370, %s372
      %p376 = scmp.eq.s32.totalorder %s30, 0
      %p377 = por %p375, %p376
      %p378 = scmp.ne.s32.totalorder %s370, %s372
      %p379 = scmp.eq.s32.totalorder %s35, 1
      %p380 = por %p378, %p379
      %p381 = scmp.ne.s32.totalorder %s372, %s373
      %p382 = scmp.eq.s32.totalorder %s35, 0
      %p383 = por %p381, %p382
      %p384 = scmp.ne.s32.totalorder %s372, %s373
      %p385 = scmp.eq.s32.totalorder %s36, 1
      %p386 = por %p384, %p385
      %p388 = scmp.ne.s32.totalorder %s373, %s387
      %p389 = scmp.eq.s32.totalorder %s36, 0
      %p390 = por %p388, %p389
      %s392 = sadd.s32 %s391, 1
      %p395 = scmp.eq.s32.totalorder %s30, 1
      %p396 = scmp.ne.s32.totalorder %s391, %s393
      %p397 = scmp.eq.s32.totalorder %s30, 0
      %p398 = por %p396, %p397
      %p399 = scmp.ne.s32.totalorder %s391, %s393
      %p400 = scmp.eq.s32.totalorder %s35, 1
      %p401 = por %p399, %p400
      %p402 = scmp.ne.s32.totalorder %s393, %s394
      %p403 = scmp.eq.s32.totalorder %s35, 0
      %p404 = por %p402, %p403
      %p405 = scmp.ne.s32.totalorder %s393, %s394
      %p406 = scmp.eq.s32.totalorder %s36, 1
      %p407 = por %p405, %p406
      %p409 = scmp.ne.s32.totalorder %s394, %s408
      %p410 = scmp.eq.s32.totalorder %s36, 0
      %p411 = por %p409, %p410
      %s412 = ssub.s32 %s37, %s49
      %s413 = ssub.s32 %s38, %s45
      %s414 = sor.u32 %s412, %s413
      %p415 = scmp.eq.s32.totalorder %s414, 0
      %s417 = sadd.s32 %s416, 1
      %s418 = scalar_select %p415, %s416, %s417
      %p421 = pneg %p415
      %p422 = scmp.eq.s32.totalorder %s30, 1
      %p423 = por %p421, %p422
      %p424 = scmp.ne.s32.totalorder %s416, %s419
      %p425 = scmp.eq.s32.totalorder %s30, 0
      %p426 = por %p424, %p425
      %p427 = scmp.ne.s32.totalorder %s416, %s419
      %p428 = scmp.eq.s32.totalorder %s35, 1
      %p429 = por %p427, %p428
      %p430 = scmp.ne.s32.totalorder %s419, %s420
      %p431 = scmp.eq.s32.totalorder %s35, 0
      %p432 = por %p430, %p431
      %p433 = scmp.ne.s32.totalorder %s419, %s420
      %p434 = scmp.eq.s32.totalorder %s36, 1
      %p435 = por %p433, %p434
      %p437 = scmp.ne.s32.totalorder %s420, %s436
      %p438 = scmp.eq.s32.totalorder %s36, 0
      %p439 = por %p437, %p438
      %p440 = scmp.le.s32.totalorder 1, %s30
      %p441 = scmp.lt.s32.totalorder %s30, 3
      %p442 = pnand %p440, %p441
      %p443 = pneg %p442
      // Predicated region
      $region9: #{tpu_custom_call.1} parent=5 // pred_check
        _
      $region10: #{tpu_custom_call.1} parent=5 // pred_check_branch
        %445 = sbr.rel (%p442) target = $region12
      $region11: #{tpu_custom_call.1} parent=5 // pred_region
        %s446 = ssub.s32 %s30, 1
        // Predicated region
        $region13: #{tpu_custom_call.1} parent=11 // pred_check
          %p447 = pneg %p89
        $region14: #{tpu_custom_call.1} parent=11 // pred_check_branch
          %449 = sbr.rel (%p447) target = $region16
        $region15: #{tpu_custom_call.1} parent=11 // pred_region
          _
        $region16: #{tpu_custom_call.1} parent=11 // pred_fallthru
          _
        // Predicated region
        $region17: #{tpu_custom_call.1} parent=11 // pred_check
          %p450 = pneg %p110
        $region18: #{tpu_custom_call.1} parent=11 // pred_check_branch
          %452 = sbr.rel (%p450) target = $region20
        $region19: #{tpu_custom_call.1} parent=11 // pred_region
          _
        $region20: #{tpu_custom_call.1} parent=11 // pred_fallthru
          _
        // Predicated region
        $region21: #{tpu_custom_call.1} parent=11 // pred_check
          %p453 = pneg %p131
        $region22: #{tpu_custom_call.1} parent=11 // pred_check_branch
          %455 = sbr.rel (%p453) target = $region24
        $region23: #{tpu_custom_call.1} parent=11 // pred_region
          _
        $region24: #{tpu_custom_call.1} parent=11 // pred_fallthru
          _
        // Predicated region
        $region25: #{tpu_custom_call.1} parent=11 // pred_check
          %p456 = pneg %p152
        $region26: #{tpu_custom_call.1} parent=11 // pred_check_branch
          %458 = sbr.rel (%p456) target = $region28
        $region27: #{tpu_custom_call.1} parent=11 // pred_region
          _
        $region28: #{tpu_custom_call.1} parent=11 // pred_fallthru
          _
        // Predicated region
        $region29: #{tpu_custom_call.1} parent=11 // pred_check
          %p459 = pneg %p173
        $region30: #{tpu_custom_call.1} parent=11 // pred_check_branch
          %461 = sbr.rel (%p459) target = $region32
        $region31: #{tpu_custom_call.1} parent=11 // pred_region
          _
        $region32: #{tpu_custom_call.1} parent=11 // pred_fallthru
          _
        // Predicated region
        $region33: #{tpu_custom_call.1} parent=11 // pred_check
          %p462 = pneg %p194
        $region34: #{tpu_custom_call.1} parent=11 // pred_check_branch
          %464 = sbr.rel (%p462) target = $region36
        $region35: #{tpu_custom_call.1} parent=11 // pred_region
          _
        $region36: #{tpu_custom_call.1} parent=11 // pred_fallthru
          _
        // Predicated region
        $region37: #{tpu_custom_call.1} parent=11 // pred_check
          %p465 = pneg %p215
        $region38: #{tpu_custom_call.1} parent=11 // pred_check_branch
          %467 = sbr.rel (%p465) target = $region40
        $region39: #{tpu_custom_call.1} parent=11 // pred_region
          %s469 = ssub.s32 512, 512
          %470 = vsyncadd [#allocation6], %s469
          %s471 = sshll.u32 [#allocation5], 4
          %s472 = int_to_ptr.vmem [resolvable:$true] %s471
          %477 = dma.hbm_to_vmem [thread:$0]  %s7, 512, %s472, [#allocation6], 128, 128, 8
        $region40: #{tpu_custom_call.1} parent=11 // pred_fallthru
          _
        // Predicated region
        $region41: #{tpu_custom_call.1} parent=11 // pred_check
          %p478 = pneg %p236
        $region42: #{tpu_custom_call.1} parent=11 // pred_check_branch
          %480 = sbr.rel (%p478) target = $region44
        $region43: #{tpu_custom_call.1} parent=11 // pred_region
          _
        $region44: #{tpu_custom_call.1} parent=11 // pred_fallthru
          _
        // Predicated region
        $region45: #{tpu_custom_call.1} parent=11 // pred_check
          %p481 = pneg %p257
        $region46: #{tpu_custom_call.1} parent=11 // pred_check_branch
          %483 = sbr.rel (%p481) target = $region48
        $region47: #{tpu_custom_call.1} parent=11 // pred_region
          _
        $region48: #{tpu_custom_call.1} parent=11 // pred_fallthru
          _
        // Predicated region
        $region49: #{tpu_custom_call.1} parent=11 // pred_check
          %p484 = pneg %p278
        $region50: #{tpu_custom_call.1} parent=11 // pred_check_branch
          %486 = sbr.rel (%p484) target = $region52
        $region51: #{tpu_custom_call.1} parent=11 // pred_region
          _
        $region52: #{tpu_custom_call.1} parent=11 // pred_fallthru
          _
        // Predicated region
        $region53: #{tpu_custom_call.1} parent=11 // pred_check
          %p487 = pneg %p299
        $region54: #{tpu_custom_call.1} parent=11 // pred_check_branch
          %489 = sbr.rel (%p487) target = $region56
        $region55: #{tpu_custom_call.1} parent=11 // pred_region
          %s491 = ssub.s32 512, 512
          %492 = vsyncadd [#allocation6], %s491
          %s493 = sshll.u32 [#allocation7], 4
          %s494 = int_to_ptr.vmem [resolvable:$true] %s493
          %499 = dma.hbm_to_vmem [thread:$0]  %s11, 512, %s494, [#allocation6], 128, 128, 8
        $region56: #{tpu_custom_call.1} parent=11 // pred_fallthru
          _
        // Predicated region
        $region57: #{tpu_custom_call.1} parent=11 // pred_check
          %p500 = pneg %p320
        $region58: #{tpu_custom_call.1} parent=11 // pred_check_branch
          %502 = sbr.rel (%p500) target = $region60
        $region59: #{tpu_custom_call.1} parent=11 // pred_region
          _
        $region60: #{tpu_custom_call.1} parent=11 // pred_fallthru
          _
        // Predicated region
        $region61: #{tpu_custom_call.1} parent=11 // pred_check
          %p503 = pneg %p341
        $region62: #{tpu_custom_call.1} parent=11 // pred_check_branch
          %505 = sbr.rel (%p503) target = $region64
        $region63: #{tpu_custom_call.1} parent=11 // pred_region
          _
        $region64: #{tpu_custom_call.1} parent=11 // pred_fallthru
          _
        // Predicated region
        $region65: #{tpu_custom_call.1} parent=11 // pred_check
          %p506 = pneg %p362
        $region66: #{tpu_custom_call.1} parent=11 // pred_check_branch
          %508 = sbr.rel (%p506) target = $region68
        $region67: #{tpu_custom_call.1} parent=11 // pred_region
          _
        $region68: #{tpu_custom_call.1} parent=11 // pred_fallthru
          _
        // Predicated region
        $region69: #{tpu_custom_call.1} parent=11 // pred_check
          %p509 = pneg %p383
        $region70: #{tpu_custom_call.1} parent=11 // pred_check_branch
          %511 = sbr.rel (%p509) target = $region72
        $region71: #{tpu_custom_call.1} parent=11 // pred_region
          _
        $region72: #{tpu_custom_call.1} parent=11 // pred_fallthru
          _
        // Predicated region
        $region73: #{tpu_custom_call.1} parent=11 // pred_check
          %p512 = pneg %p404
        $region74: #{tpu_custom_call.1} parent=11 // pred_check_branch
          %514 = sbr.rel (%p512) target = $region76
        $region75: #{tpu_custom_call.1} parent=11 // pred_region
          _
        $region76: #{tpu_custom_call.1} parent=11 // pred_fallthru
          _
      $region12: #{tpu_custom_call.1} parent=5 // pred_fallthru
        _
      %p515 = scmp.lt.s32.totalorder %s30, 2
      // Predicated region
      $region77: #{tpu_custom_call.1} parent=5 // pred_check
        %p516 = pneg %p515
      $region78: #{tpu_custom_call.1} parent=5 // pred_check_branch
        %518 = sbr.rel (%p516) target = $region80
      $region79: #{tpu_custom_call.1} parent=5 // pred_region
        // Predicated region
        $region81: #{tpu_custom_call.1} parent=79 // pred_check
          %p519 = pneg %p62
        $region82: #{tpu_custom_call.1} parent=79 // pred_check_branch
          %521 = sbr.rel (%p519) target = $region84
        $region83: #{tpu_custom_call.1} parent=79 // pred_region
          %s522 = sand.u32 %s52, 1
          %s523 = scalar_lea.sflag [#allocation3], %s522
          %s524 = sand.u32 %s52, 1
          %s525 = smul.addr %s524, 8
          %s526 = scalar_lea.vmem [#allocation2], %s525
          %s528 = ssub.s32 128, 128
          %529 = vsyncadd %s523, %s528
          %s530 = smul.addr %s37, 128
          %s531 = scalar_lea.hbm %s0, %s530
          %s533 = sshll.u32 %s526, 4
          %s534 = int_to_ptr.vmem [resolvable:$true] %s533
          %536 = dma.hbm_to_vmem [thread:$0]  %s531, 128, %s534, %s523
        $region84: #{tpu_custom_call.1} parent=79 // pred_fallthru
          _
      $region80: #{tpu_custom_call.1} parent=5 // pred_fallthru
        _
      %p537 = scmp.le.s32.totalorder 1, %s30
      %p538 = scmp.lt.s32.totalorder %s30, 3
      %p539 = pnand %p537, %p538
      %p540 = pneg %p539
      // Predicated region
      $region85: #{tpu_custom_call.1} parent=5 // pred_check
        _
      $region86: #{tpu_custom_call.1} parent=5 // pred_check_branch
        %542 = sbr.rel (%p539) target = $region88
      $region87: #{tpu_custom_call.1} parent=5 // pred_region
        %s543 = ssub.s32 %s30, 1
        %s544 = sand.u32 %s55, 1
        %s545 = scalar_lea.sflag [#allocation3], %s544
        %s546 = sand.u32 %s55, 1
        %s547 = smul.addr %s546, 8
        %s548 = scalar_lea.vmem [#allocation2], %s547
        // Predicated region
        $region89: #{tpu_custom_call.1} parent=87 // pred_check
          %p549 = pneg %p68
        $region90: #{tpu_custom_call.1} parent=87 // pred_check_branch
          %551 = sbr.rel (%p549) target = $region92
        $region91: #{tpu_custom_call.1} parent=87 // pred_region
          %552 = dma.done %s545, 128
        $region92: #{tpu_custom_call.1} parent=87 // pred_fallthru
          _
        // Predicated region
        $region93: #{tpu_custom_call.1} parent=87 // pred_check
          %p553 = pneg %p215
        $region94: #{tpu_custom_call.1} parent=87 // pred_check_branch
          %555 = sbr.rel (%p553) target = $region96
        $region95: #{tpu_custom_call.1} parent=87 // pred_region
          %556 = dma.done [#allocation6], 512
        $region96: #{tpu_custom_call.1} parent=87 // pred_fallthru
          _
        // Predicated region
        $region97: #{tpu_custom_call.1} parent=87 // pred_check
          %p557 = pneg %p299
        $region98: #{tpu_custom_call.1} parent=87 // pred_check_branch
          %559 = sbr.rel (%p557) target = $region100
        $region99: #{tpu_custom_call.1} parent=87 // pred_region
          %560 = dma.done [#allocation6], 512
        $region100: #{tpu_custom_call.1} parent=87 // pred_fallthru
          _
        %s561 = sand.u32 %s55, 1
        %s562 = scalar_lea.sflag [#allocation3], %s561
        %s563 = sand.u32 %s55, 1
        %s564 = smul.addr %s563, 8
        %s565 = scalar_lea.vmem [#allocation2], %s564
        %p566 = pneg %p68
        %p567 = pneg %p65
        %p568 = pneg %p89
        %p569 = pneg %p86
        %p570 = pneg %p110
        %p571 = pneg %p107
        %p572 = pneg %p131
        %p573 = pneg %p128
        %p574 = pneg %p152
        %p575 = pneg %p149
        %p576 = pneg %p173
        %p577 = pneg %p170
        %p578 = pneg %p194
        %p579 = pneg %p191
        %p580 = pneg %p215
        %p581 = pneg %p212
        %p582 = pneg %p236
        %p583 = pneg %p233
        %p584 = pneg %p257
        %p585 = pneg %p254
        %p586 = pneg %p278
        %p587 = pneg %p275
        %p588 = pneg %p299
        %p589 = pneg %p296
        %p590 = pneg %p320
        %p591 = pneg %p317
        %p592 = pneg %p341
        %p593 = pneg %p338
        %p594 = pneg %p362
        %p595 = pneg %p359
        %p596 = pneg %p383
        %p597 = pneg %p380
        %p598 = pneg %p404
        %p599 = pneg %p401
        %p600 = pneg %p432
        %p601 = pneg %p429
        %s602 = sand.u32 %s419, 1
        %s603 = scalar_lea.sflag [#allocation4], %s602
        %s604 = sand.u32 %s419, 1
        %s605 = smul.addr %s604, 8
        %s606 = scalar_lea.vmem [#allocation8], %s605
        %v608 = vld [vmem:[%s548] sm:$0xff]
        %s609 = smul.u32 %s40, 8
        %s610 = scalar_lea.vmem %s548, %s609 [#allocation2]
        %v611 = vld [vmem:[%s610] sm:$0xff]
        %v612 = vpack.c.bf16 %v611, %v611
        %v613 = vld [vmem:[%s1] sm:$0xff]
        %v614 = vld [vmem:[%s1 + $0x8] sm:$0xff]
        %v615 = vld [vmem:[%s1 + $0x10] sm:$0xff]
        %v616 = vld [vmem:[%s1 + $0x18] sm:$0xff]
        %v617 = vpack.c.bf16 %v614, %v613
        %v618 = vpack.c.bf16 %v616, %v615
        %v619 = vld [vmem:[%s2] sm:$0x1]
        %v621 = vlaneseq
        %v622 = vshrl.u32 %v621, 7
        %v623 = vsub.s32 0, %v622
        %v624 = vrot.slane %v619, %v623
        %vm626 = vcmask 261120
        %v628 = vsel %vm626, %v612, 0
        %630 = vmatprep.subr.bf16.mxu0 0
        %631 = vmatpush1.bf16.msra.mxu0 %v617
        %632 = vmatprep.subr.bf16.mxu0 0
        %633 = vmatpush1.bf16.msra.mxu0 %v618
        %634 = vmatprep.subr.bf16.mxu0 0
        %635 = vmatpush1.bf16.msra.mxu0 0
        %636 = vmatprep.subr.bf16.mxu0 0
        %637 = vmatpush1.bf16.msra.mxu0 0
        %638 = vmatprep.subr.bf16.mxu0 0
        %639 = vmatpush1.bf16.msra.mxu0 0
        %640 = vmatprep.subr.bf16.mxu0 0
        %641 = vmatpush1.bf16.msra.mxu0 0
        %642 = vmatprep.subr.bf16.mxu0 0
        %643 = vmatpush1.bf16.msra.mxu0 0
        %644 = vmatprep.subr.bf16.mxu0 0
        %645 = vmatpush1.bf16.msra.mxu0 0
        %646 = vmatprep.subr.bf16.mxu0 0
        %647 = vmatpush1.bf16.msra.mxu0 0
        %648 = vmatprep.subr.bf16.mxu0 0
        %649 = vmatpush1.bf16.msra.mxu0 0
        %650 = vmatprep.subr.bf16.mxu0 0
        %651 = vmatpush1.bf16.msra.mxu0 0
        %652 = vmatprep.subr.bf16.mxu0 0
        %653 = vmatpush1.bf16.msra.mxu0 0
        %654 = vmatprep.subr.bf16.mxu0 0
        %655 = vmatpush1.bf16.msra.mxu0 0
        %656 = vmatprep.subr.bf16.mxu0 0
        %657 = vmatpush1.bf16.msra.mxu0 0
        %658 = vmatprep.subr.bf16.mxu0 0
        %659 = vmatpush1.bf16.msra.mxu0 0
        %660 = vmatprep.subr.bf16.mxu0 0
        %661 = vmatpush1.bf16.msra.mxu0 0
        %662 = vmatprep.mubr.bf16.mxu0 0
        %663 = vmatmul.mubr.bf16.gmra.mrb[0].mxu0 %v628
        %v664 = vpop.f32.mrb[0].mxu0
        %v665 = vadd.f32 %v624, %v664
        %v666 = vpop.f32.mrb[0].mxu0
        %v667 = vpop.f32.mrb[0].mxu0
        %v668 = vpop.f32.mrb[0].mxu0
        %669 = vdwg.mxu0
        %v670 = vpack.c.bf16 %v608, %v608
        %v671 = vld [vmem:[%s3] sm:$0xff]
        %v672 = vld [vmem:[%s3 + $0x8] sm:$0xff]
        %v673 = vld [vmem:[%s3 + $0x10] sm:$0xff]
        %v674 = vld [vmem:[%s3 + $0x18] sm:$0xff]
        %v675 = vpack.c.bf16 %v672, %v671
        %v676 = vpack.c.bf16 %v674, %v673
        %v677 = vld [vmem:[%s4] sm:$0x1]
        %v679 = vlaneseq
        %v680 = vshrl.u32 %v679, 7
        %v681 = vsub.s32 0, %v680
        %v682 = vrot.slane %v677, %v681
        %v685 = vsel %vm626, %v670, 0
        %687 = vmatprep.subr.bf16.mxu0 0
        %688 = vmatpush1.bf16.msra.mxu0 %v675
        %689 = vmatprep.subr.bf16.mxu0 0
        %690 = vmatpush1.bf16.msra.mxu0 %v676
        %691 = vmatprep.subr.bf16.mxu0 0
        %692 = vmatpush1.bf16.msra.mxu0 0
        %693 = vmatprep.subr.bf16.mxu0 0
        %694 = vmatpush1.bf16.msra.mxu0 0
        %695 = vmatprep.subr.bf16.mxu0 0
        %696 = vmatpush1.bf16.msra.mxu0 0
        %697 = vmatprep.subr.bf16.mxu0 0
        %698 = vmatpush1.bf16.msra.mxu0 0
        %699 = vmatprep.subr.bf16.mxu0 0
        %700 = vmatpush1.bf16.msra.mxu0 0
        %701 = vmatprep.subr.bf16.mxu0 0
        %702 = vmatpush1.bf16.msra.mxu0 0
        %703 = vmatprep.subr.bf16.mxu0 0
        %704 = vmatpush1.bf16.msra.mxu0 0
        %705 = vmatprep.subr.bf16.mxu0 0
        %706 = vmatpush1.bf16.msra.mxu0 0
        %707 = vmatprep.subr.bf16.mxu0 0
        %708 = vmatpush1.bf16.msra.mxu0 0
        %709 = vmatprep.subr.bf16.mxu0 0
        %710 = vmatpush1.bf16.msra.mxu0 0
        %711 = vmatprep.subr.bf16.mxu0 0
        %712 = vmatpush1.bf16.msra.mxu0 0
        %713 = vmatprep.subr.bf16.mxu0 0
        %714 = vmatpush1.bf16.msra.mxu0 0
        %715 = vmatprep.subr.bf16.mxu0 0
        %716 = vmatpush1.bf16.msra.mxu0 0
        %717 = vmatprep.subr.bf16.mxu0 0
        %718 = vmatpush1.bf16.msra.mxu0 0
        %719 = vmatprep.mubr.bf16.mxu0 0
        %720 = vmatmul.mubr.bf16.gmra.mrb[0].mxu0 %v685
        %v721 = vpop.f32.mrb[0].mxu0
        %v722 = vadd.f32 %v682, %v721
        %v723 = vpop.f32.mrb[0].mxu0
        %v724 = vpop.f32.mrb[0].mxu0
        %v725 = vpop.f32.mrb[0].mxu0
        %726 = vdwg.mxu0
        %v727 = vld [vmem:[%s5] sm:$0xff]
        %v728 = vld [vmem:[%s5 + $0x8] sm:$0xff]
        %v729 = vld [vmem:[%s5 + $0x10] sm:$0xff]
        %v730 = vld [vmem:[%s5 + $0x18] sm:$0xff]
        %v731 = vpack.c.bf16 %v728, %v727
        %v732 = vpack.c.bf16 %v730, %v729
        %v733 = vld [vmem:[%s6] sm:$0x1]
        %v735 = vlaneseq
        %v736 = vshrl.u32 %v735, 7
        %v737 = vsub.s32 0, %v736
        %v738 = vrot.slane %v733, %v737
        %740 = vmatprep.subr.bf16.mxu0 0
        %741 = vmatpush1.bf16.msra.mxu0 %v731
        %742 = vmatprep.subr.bf16.mxu0 0
        %743 = vmatpush1.bf16.msra.mxu0 %v732
        %744 = vmatprep.subr.bf16.mxu0 0
        %745 = vmatpush1.bf16.msra.mxu0 0
        %746 = vmatprep.subr.bf16.mxu0 0
        %747 = vmatpush1.bf16.msra.mxu0 0
        %748 = vmatprep.subr.bf16.mxu0 0
        %749 = vmatpush1.bf16.msra.mxu0 0
        %750 = vmatprep.subr.bf16.mxu0 0
        %751 = vmatpush1.bf16.msra.mxu0 0
        %752 = vmatprep.subr.bf16.mxu0 0
        %753 = vmatpush1.bf16.msra.mxu0 0
        %754 = vmatprep.subr.bf16.mxu0 0
        %755 = vmatpush1.bf16.msra.mxu0 0
        %756 = vmatprep.subr.bf16.mxu0 0
        %757 = vmatpush1.bf16.msra.mxu0 0
        %758 = vmatprep.subr.bf16.mxu0 0
        %759 = vmatpush1.bf16.msra.mxu0 0
        %760 = vmatprep.subr.bf16.mxu0 0
        %761 = vmatpush1.bf16.msra.mxu0 0
        %762 = vmatprep.subr.bf16.mxu0 0
        %763 = vmatpush1.bf16.msra.mxu0 0
        %764 = vmatprep.subr.bf16.mxu0 0
        %765 = vmatpush1.bf16.msra.mxu0 0
        %766 = vmatprep.subr.bf16.mxu0 0
        %767 = vmatpush1.bf16.msra.mxu0 0
        %768 = vmatprep.subr.bf16.mxu0 0
        %769 = vmatpush1.bf16.msra.mxu0 0
        %770 = vmatprep.subr.bf16.mxu0 0
        %771 = vmatpush1.bf16.msra.mxu0 0
        %772 = vmatprep.mubr.bf16.mxu0 0
        %773 = vmatmul.mubr.bf16.gmra.mrb[0].mxu0 %v685
        %v774 = vpop.f32.mrb[0].mxu0
        %v775 = vadd.f32 %v738, %v774
        %v776 = vpop.f32.mrb[0].mxu0
        %v777 = vpop.f32.mrb[0].mxu0
        %v778 = vpop.f32.mrb[0].mxu0
        %779 = vdwg.mxu0
        %781 = vrot.lane.b32.xlu0 %v665, 120
        %v782 = vpop.permute.xlu0 %781
        %784 = vrot.lane.b32.xlu0 %v665, 112
        %v785 = vpop.permute.xlu0 %784
        %787 = vrot.lane.b32.xlu0 %v665, 104
        %v788 = vpop.permute.xlu0 %787
        %v790 = vcombine.low %v665, %v785
        %v791 = vcombine.high %v665, %v785
        %v793 = vunpack.c.l.s4 1983009808
        %v794 = vunpack.c.0.s8 %v793
        %v795 = vlaneseq
        %v796 = vshrl.u32 %v795, 7
        %v797 = vsub.s32 %v794, %v796
        %v798 = vrot.slane %v790, %v797
        %v800 = vunpack.c.l.s4 1983009808
        %v801 = vunpack.c.0.s8 %v800
        %v802 = vlaneseq
        %v803 = vshrl.u32 %v802, 7
        %v804 = vsub.s32 %v801, %v803
        %v805 = vrot.slane %v791, %v804
        %v806 = vcombine.low %v782, %v788
        %v807 = vcombine.high %v782, %v788
        %v809 = vunpack.c.l.s4 1983009808
        %v810 = vunpack.c.0.s8 %v809
        %v811 = vlaneseq
        %v812 = vshrl.u32 %v811, 7
        %v813 = vsub.s32 %v810, %v812
        %v814 = vrot.slane %v806, %v813
        %v816 = vunpack.c.l.s4 1983009808
        %v817 = vunpack.c.0.s8 %v816
        %v818 = vlaneseq
        %v819 = vshrl.u32 %v818, 7
        %v820 = vsub.s32 %v817, %v819
        %v821 = vrot.slane %v807, %v820
        %v822 = vcombine.low %v798, %v814
        %v823 = vcombine.high %v798, %v814
        %v825 = vunpack.c.l.s4 1934713408
        %v826 = vunpack.c.0.s8 %v825
        %v827 = vlaneseq
        %v828 = vshrl.u32 %v827, 7
        %v829 = vsub.s32 %v826, %v828
        %v830 = vrot.slane %v822, %v829
        %v832 = vunpack.c.l.s4 1934713408
        %v833 = vunpack.c.0.s8 %v832
        %v834 = vlaneseq
        %v835 = vshrl.u32 %v834, 7
        %v836 = vsub.s32 %v833, %v835
        %v837 = vrot.slane %v823, %v836
        %v838 = vcombine.low %v805, %v821
        %v839 = vcombine.high %v805, %v821
        %v841 = vunpack.c.l.s4 1934713408
        %v842 = vunpack.c.0.s8 %v841
        %v843 = vlaneseq
        %v844 = vshrl.u32 %v843, 7
        %v845 = vsub.s32 %v842, %v844
        %v846 = vrot.slane %v838, %v845
        %v848 = vunpack.c.l.s4 1934713408
        %v849 = vunpack.c.0.s8 %v848
        %v850 = vlaneseq
        %v851 = vshrl.u32 %v850, 7
        %v852 = vsub.s32 %v849, %v851
        %v853 = vrot.slane %v839, %v852
        %v854 = vcombine.high %v830, 0.0
        %v855 = vcombine.high %v837, 0.0
        %v856 = vcombine.high %v846, 0.0
        %v857 = vcombine.high %v853, 0.0
        %v858 = vcombine.low %v830, %v837
        %v860 = vunpack.c.l.s4 1983009808
        %v861 = vunpack.c.0.s8 %v860
        %v862 = vlaneseq
        %v863 = vshrl.u32 %v862, 7
        %v864 = vsub.s32 %v861, %v863
        %v865 = vrot.slane %v858, %v864
        %v866 = vcombine.low %v854, %v855
        %v868 = vunpack.c.l.s4 1983009808
        %v869 = vunpack.c.0.s8 %v868
        %v870 = vlaneseq
        %v871 = vshrl.u32 %v870, 7
        %v872 = vsub.s32 %v869, %v871
        %v873 = vrot.slane %v866, %v872
        %v874 = vcombine.low %v846, %v853
        %v876 = vunpack.c.l.s4 1983009808
        %v877 = vunpack.c.0.s8 %v876
        %v878 = vlaneseq
        %v879 = vshrl.u32 %v878, 7
        %v880 = vsub.s32 %v877, %v879
        %v881 = vrot.slane %v874, %v880
        %v882 = vcombine.low %v856, %v857
        %v884 = vunpack.c.l.s4 1983009808
        %v885 = vunpack.c.0.s8 %v884
        %v886 = vlaneseq
        %v887 = vshrl.u32 %v886, 7
        %v888 = vsub.s32 %v885, %v887
        %v889 = vrot.slane %v882, %v888
        %v890 = vcombine.low %v865, %v873
        %v891 = vcombine.high %v865, %v873
        %v893 = vunpack.c.l.s4 1934713408
        %v894 = vunpack.c.0.s8 %v893
        %v895 = vlaneseq
        %v896 = vshrl.u32 %v895, 7
        %v897 = vsub.s32 %v894, %v896
        %v898 = vrot.slane %v890, %v897
        %v900 = vunpack.c.l.s4 1934713408
        %v901 = vunpack.c.0.s8 %v900
        %v902 = vlaneseq
        %v903 = vshrl.u32 %v902, 7
        %v904 = vsub.s32 %v901, %v903
        %v905 = vrot.slane %v891, %v904
        %v906 = vcombine.low %v881, %v889
        %v907 = vcombine.high %v881, %v889
        %v909 = vunpack.c.l.s4 1934713408
        %v910 = vunpack.c.0.s8 %v909
        %v911 = vlaneseq
        %v912 = vshrl.u32 %v911, 7
        %v913 = vsub.s32 %v910, %v912
        %v914 = vrot.slane %v906, %v913
        %v916 = vunpack.c.l.s4 1934713408
        %v917 = vunpack.c.0.s8 %v916
        %v918 = vlaneseq
        %v919 = vshrl.u32 %v918, 7
        %v920 = vsub.s32 %v917, %v919
        %v921 = vrot.slane %v907, %v920
        %v922 = vcombine.low %v898, %v914
        %v923 = vcombine.high %v898, %v914
        %v924 = vcombine.low %v905, %v921
        %v925 = vcombine.high %v905, %v921
        %927 = vrot.lane.b32.xlu0 %v722, 120
        %v928 = vpop.permute.xlu0 %927
        %930 = vrot.lane.b32.xlu0 %v722, 112
        %v931 = vpop.permute.xlu0 %930
        %933 = vrot.lane.b32.xlu0 %v722, 104
        %v934 = vpop.permute.xlu0 %933
        %v936 = vcombine.low %v722, %v931
        %v937 = vcombine.high %v722, %v931
        %v939 = vunpack.c.l.s4 1983009808
        %v940 = vunpack.c.0.s8 %v939
        %v941 = vlaneseq
        %v942 = vshrl.u32 %v941, 7
        %v943 = vsub.s32 %v940, %v942
        %v944 = vrot.slane %v936, %v943
        %v946 = vunpack.c.l.s4 1983009808
        %v947 = vunpack.c.0.s8 %v946
        %v948 = vlaneseq
        %v949 = vshrl.u32 %v948, 7
        %v950 = vsub.s32 %v947, %v949
        %v951 = vrot.slane %v937, %v950
        %v952 = vcombine.low %v928, %v934
        %v953 = vcombine.high %v928, %v934
        %v955 = vunpack.c.l.s4 1983009808
        %v956 = vunpack.c.0.s8 %v955
        %v957 = vlaneseq
        %v958 = vshrl.u32 %v957, 7
        %v959 = vsub.s32 %v956, %v958
        %v960 = vrot.slane %v952, %v959
        %v962 = vunpack.c.l.s4 1983009808
        %v963 = vunpack.c.0.s8 %v962
        %v964 = vlaneseq
        %v965 = vshrl.u32 %v964, 7
        %v966 = vsub.s32 %v963, %v965
        %v967 = vrot.slane %v953, %v966
        %v968 = vcombine.low %v944, %v960
        %v969 = vcombine.high %v944, %v960
        %v971 = vunpack.c.l.s4 1934713408
        %v972 = vunpack.c.0.s8 %v971
        %v973 = vlaneseq
        %v974 = vshrl.u32 %v973, 7
        %v975 = vsub.s32 %v972, %v974
        %v976 = vrot.slane %v968, %v975
        %v978 = vunpack.c.l.s4 1934713408
        %v979 = vunpack.c.0.s8 %v978
        %v980 = vlaneseq
        %v981 = vshrl.u32 %v980, 7
        %v982 = vsub.s32 %v979, %v981
        %v983 = vrot.slane %v969, %v982
        %v984 = vcombine.low %v951, %v967
        %v985 = vcombine.high %v951, %v967
        %v987 = vunpack.c.l.s4 1934713408
        %v988 = vunpack.c.0.s8 %v987
        %v989 = vlaneseq
        %v990 = vshrl.u32 %v989, 7
        %v991 = vsub.s32 %v988, %v990
        %v992 = vrot.slane %v984, %v991
        %v994 = vunpack.c.l.s4 1934713408
        %v995 = vunpack.c.0.s8 %v994
        %v996 = vlaneseq
        %v997 = vshrl.u32 %v996, 7
        %v998 = vsub.s32 %v995, %v997
        %v999 = vrot.slane %v985, %v998
        %v1000 = vcombine.high %v976, 0.0
        %v1001 = vcombine.high %v983, 0.0
        %v1002 = vcombine.high %v992, 0.0
        %v1003 = vcombine.high %v999, 0.0
        %v1004 = vcombine.low %v976, %v983
        %v1006 = vunpack.c.l.s4 1983009808
        %v1007 = vunpack.c.0.s8 %v1006
        %v1008 = vlaneseq
        %v1009 = vshrl.u32 %v1008, 7
        %v1010 = vsub.s32 %v1007, %v1009
        %v1011 = vrot.slane %v1004, %v1010
        %v1012 = vcombine.low %v1000, %v1001
        %v1014 = vunpack.c.l.s4 1983009808
        %v1015 = vunpack.c.0.s8 %v1014
        %v1016 = vlaneseq
        %v1017 = vshrl.u32 %v1016, 7
        %v1018 = vsub.s32 %v1015, %v1017
        %v1019 = vrot.slane %v1012, %v1018
        %v1020 = vcombine.low %v992, %v999
        %v1022 = vunpack.c.l.s4 1983009808
        %v1023 = vunpack.c.0.s8 %v1022
        %v1024 = vlaneseq
        %v1025 = vshrl.u32 %v1024, 7
        %v1026 = vsub.s32 %v1023, %v1025
        %v1027 = vrot.slane %v1020, %v1026
        %v1028 = vcombine.low %v1002, %v1003
        %v1030 = vunpack.c.l.s4 1983009808
        %v1031 = vunpack.c.0.s8 %v1030
        %v1032 = vlaneseq
        %v1033 = vshrl.u32 %v1032, 7
        %v1034 = vsub.s32 %v1031, %v1033
        %v1035 = vrot.slane %v1028, %v1034
        %v1036 = vcombine.low %v1011, %v1019
        %v1037 = vcombine.high %v1011, %v1019
        %v1039 = vunpack.c.l.s4 1934713408
        %v1040 = vunpack.c.0.s8 %v1039
        %v1041 = vlaneseq
        %v1042 = vshrl.u32 %v1041, 7
        %v1043 = vsub.s32 %v1040, %v1042
        %v1044 = vrot.slane %v1036, %v1043
        %v1046 = vunpack.c.l.s4 1934713408
        %v1047 = vunpack.c.0.s8 %v1046
        %v1048 = vlaneseq
        %v1049 = vshrl.u32 %v1048, 7
        %v1050 = vsub.s32 %v1047, %v1049
        %v1051 = vrot.slane %v1037, %v1050
        %v1052 = vcombine.low %v1027, %v1035
        %v1053 = vcombine.high %v1027, %v1035
        %v1055 = vunpack.c.l.s4 1934713408
        %v1056 = vunpack.c.0.s8 %v1055
        %v1057 = vlaneseq
        %v1058 = vshrl.u32 %v1057, 7
        %v1059 = vsub.s32 %v1056, %v1058
        %v1060 = vrot.slane %v1052, %v1059
        %v1062 = vunpack.c.l.s4 1934713408
        %v1063 = vunpack.c.0.s8 %v1062
        %v1064 = vlaneseq
        %v1065 = vshrl.u32 %v1064, 7
        %v1066 = vsub.s32 %v1063, %v1065
        %v1067 = vrot.slane %v1053, %v1066
        %v1068 = vcombine.low %v1044, %v1060
        %v1069 = vcombine.high %v1044, %v1060
        %v1070 = vcombine.low %v1051, %v1067
        %v1071 = vcombine.high %v1051, %v1067
        %1073 = vrot.lane.b32.xlu0 %v775, 120
        %v1074 = vpop.permute.xlu0 %1073
        %1076 = vrot.lane.b32.xlu0 %v775, 112
        %v1077 = vpop.permute.xlu0 %1076
        %1079 = vrot.lane.b32.xlu0 %v775, 104
        %v1080 = vpop.permute.xlu0 %1079
        %v1082 = vcombine.low %v775, %v1077
        %v1083 = vcombine.high %v775, %v1077
        %v1085 = vunpack.c.l.s4 1983009808
        %v1086 = vunpack.c.0.s8 %v1085
        %v1087 = vlaneseq
        %v1088 = vshrl.u32 %v1087, 7
        %v1089 = vsub.s32 %v1086, %v1088
        %v1090 = vrot.slane %v1082, %v1089
        %v1092 = vunpack.c.l.s4 1983009808
        %v1093 = vunpack.c.0.s8 %v1092
        %v1094 = vlaneseq
        %v1095 = vshrl.u32 %v1094, 7
        %v1096 = vsub.s32 %v1093, %v1095
        %v1097 = vrot.slane %v1083, %v1096
        %v1098 = vcombine.low %v1074, %v1080
        %v1099 = vcombine.high %v1074, %v1080
        %v1101 = vunpack.c.l.s4 1983009808
        %v1102 = vunpack.c.0.s8 %v1101
        %v1103 = vlaneseq
        %v1104 = vshrl.u32 %v1103, 7
        %v1105 = vsub.s32 %v1102, %v1104
        %v1106 = vrot.slane %v1098, %v1105
        %v1108 = vunpack.c.l.s4 1983009808
        %v1109 = vunpack.c.0.s8 %v1108
        %v1110 = vlaneseq
        %v1111 = vshrl.u32 %v1110, 7
        %v1112 = vsub.s32 %v1109, %v1111
        %v1113 = vrot.slane %v1099, %v1112
        %v1114 = vcombine.low %v1090, %v1106
        %v1115 = vcombine.high %v1090, %v1106
        %v1117 = vunpack.c.l.s4 1934713408
        %v1118 = vunpack.c.0.s8 %v1117
        %v1119 = vlaneseq
        %v1120 = vshrl.u32 %v1119, 7
        %v1121 = vsub.s32 %v1118, %v1120
        %v1122 = vrot.slane %v1114, %v1121
        %v1124 = vunpack.c.l.s4 1934713408
        %v1125 = vunpack.c.0.s8 %v1124
        %v1126 = vlaneseq
        %v1127 = vshrl.u32 %v1126, 7
        %v1128 = vsub.s32 %v1125, %v1127
        %v1129 = vrot.slane %v1115, %v1128
        %v1130 = vcombine.low %v1097, %v1113
        %v1131 = vcombine.high %v1097, %v1113
        %v1133 = vunpack.c.l.s4 1934713408
        %v1134 = vunpack.c.0.s8 %v1133
        %v1135 = vlaneseq
        %v1136 = vshrl.u32 %v1135, 7
        %v1137 = vsub.s32 %v1134, %v1136
        %v1138 = vrot.slane %v1130, %v1137
        %v1140 = vunpack.c.l.s4 1934713408
        %v1141 = vunpack.c.0.s8 %v1140
        %v1142 = vlaneseq
        %v1143 = vshrl.u32 %v1142, 7
        %v1144 = vsub.s32 %v1141, %v1143
        %v1145 = vrot.slane %v1131, %v1144
        %v1146 = vcombine.high %v1122, 0.0
        %v1147 = vcombine.high %v1129, 0.0
        %v1148 = vcombine.high %v1138, 0.0
        %v1149 = vcombine.high %v1145, 0.0
        %v1150 = vcombine.low %v1122, %v1129
        %v1152 = vunpack.c.l.s4 1983009808
        %v1153 = vunpack.c.0.s8 %v1152
        %v1154 = vlaneseq
        %v1155 = vshrl.u32 %v1154, 7
        %v1156 = vsub.s32 %v1153, %v1155
        %v1157 = vrot.slane %v1150, %v1156
        %v1158 = vcombine.low %v1146, %v1147
        %v1160 = vunpack.c.l.s4 1983009808
        %v1161 = vunpack.c.0.s8 %v1160
        %v1162 = vlaneseq
        %v1163 = vshrl.u32 %v1162, 7
        %v1164 = vsub.s32 %v1161, %v1163
        %v1165 = vrot.slane %v1158, %v1164
        %v1166 = vcombine.low %v1138, %v1145
        %v1168 = vunpack.c.l.s4 1983009808
        %v1169 = vunpack.c.0.s8 %v1168
        %v1170 = vlaneseq
        %v1171 = vshrl.u32 %v1170, 7
        %v1172 = vsub.s32 %v1169, %v1171
        %v1173 = vrot.slane %v1166, %v1172
        %v1174 = vcombine.low %v1148, %v1149
        %v1176 = vunpack.c.l.s4 1983009808
        %v1177 = vunpack.c.0.s8 %v1176
        %v1178 = vlaneseq
        %v1179 = vshrl.u32 %v1178, 7
        %v1180 = vsub.s32 %v1177, %v1179
        %v1181 = vrot.slane %v1174, %v1180
        %v1182 = vcombine.low %v1157, %v1165
        %v1183 = vcombine.high %v1157, %v1165
        %v1185 = vunpack.c.l.s4 1934713408
        %v1186 = vunpack.c.0.s8 %v1185
        %v1187 = vlaneseq
        %v1188 = vshrl.u32 %v1187, 7
        %v1189 = vsub.s32 %v1186, %v1188
        %v1190 = vrot.slane %v1182, %v1189
        %v1192 = vunpack.c.l.s4 1934713408
        %v1193 = vunpack.c.0.s8 %v1192
        %v1194 = vlaneseq
        %v1195 = vshrl.u32 %v1194, 7
        %v1196 = vsub.s32 %v1193, %v1195
        %v1197 = vrot.slane %v1183, %v1196
        %v1198 = vcombine.low %v1173, %v1181
        %v1199 = vcombine.high %v1173, %v1181
        %v1201 = vunpack.c.l.s4 1934713408
        %v1202 = vunpack.c.0.s8 %v1201
        %v1203 = vlaneseq
        %v1204 = vshrl.u32 %v1203, 7
        %v1205 = vsub.s32 %v1202, %v1204
        %v1206 = vrot.slane %v1198, %v1205
        %v1208 = vunpack.c.l.s4 1934713408
        %v1209 = vunpack.c.0.s8 %v1208
        %v1210 = vlaneseq
        %v1211 = vshrl.u32 %v1210, 7
        %v1212 = vsub.s32 %v1209, %v1211
        %v1213 = vrot.slane %v1199, %v1212
        %v1214 = vcombine.low %v1190, %v1206
        %v1215 = vcombine.high %v1190, %v1206
        %v1216 = vcombine.low %v1197, %v1213
        %v1217 = vcombine.high %v1197, %v1213
        %v1218 = vpack.c.bf16 %v922, %v922
        %v1219 = vpack.c.bf16 %v923, %v923
        %v1220 = vpack.c.bf16 %v924, %v924
        %v1221 = vpack.c.bf16 %v925, %v925
        %v1222 = vpack.c.bf16 %v1068, %v1068
        %v1223 = vpack.c.bf16 %v1069, %v1069
        %v1224 = vpack.c.bf16 %v1070, %v1070
        %v1225 = vpack.c.bf16 %v1071, %v1071
        %vm1226 = vcmask 64512
        %v1228 = vsel %vm1226, %v1218, 0
        %v1231 = vsel %vm1226, %v1222, 0
        %1233 = vmatprep.subr.bf16.mxu0 0
        %1234 = vmatpush1.bf16.xpose.msra.mxu0 %v1231
        %1235 = vmatprep.subr.bf16.mxu0 0
        %1236 = vmatpush1.bf16.xpose.msra.mxu0 0
        %1237 = vmatprep.subr.bf16.mxu0 0
        %1238 = vmatpush1.bf16.xpose.msra.mxu0 0
        %1239 = vmatprep.subr.bf16.mxu0 0
        %1240 = vmatpush1.bf16.xpose.msra.mxu0 0
        %1241 = vmatprep.subr.bf16.mxu0 0
        %1242 = vmatpush1.bf16.xpose.msra.mxu0 0
        %1243 = vmatprep.subr.bf16.mxu0 0
        %1244 = vmatpush1.bf16.xpose.msra.mxu0 0
        %1245 = vmatprep.subr.bf16.mxu0 0
        %1246 = vmatpush1.bf16.xpose.msra.mxu0 0
        %1247 = vmatprep.subr.bf16.mxu0 0
        %1248 = vmatpush1.bf16.xpose.msra.mxu0 0
        %1249 = vmatprep.subr.bf16.mxu0 0
        %1250 = vmatpush1.bf16.xpose.msra.mxu0 0
        %1251 = vmatprep.subr.bf16.mxu0 0
        %1252 = vmatpush1.bf16.xpose.msra.mxu0 0
        %1253 = vmatprep.subr.bf16.mxu0 0
        %1254 = vmatpush1.bf16.xpose.msra.mxu0 0
        %1255 = vmatprep.subr.bf16.mxu0 0
        %1256 = vmatpush1.bf16.xpose.msra.mxu0 0
        %1257 = vmatprep.subr.bf16.mxu0 0
        %1258 = vmatpush1.bf16.xpose.msra.mxu0 0
        %1259 = vmatprep.subr.bf16.mxu0 0
        %1260 = vmatpush1.bf16.xpose.msra.mxu0 0
        %1261 = vmatprep.subr.bf16.mxu0 0
        %1262 = vmatpush1.bf16.xpose.msra.mxu0 0
        %1263 = vmatprep.subr.bf16.mxu0 0
        %1264 = vmatpush1.bf16.xpose.msra.mxu0 0
        %1265 = vmatprep.mubr.bf16.mxu0 0
        %1266 = vmatmul.mubr.bf16.gmra.mrb[0].mxu0 %v1228
        %v1267 = vpop.f32.mrb[0].mxu0
        %v1268 = vadd.f32 0.0, %v1267
        %v1269 = vpop.f32.mrb[0].mxu0
        %v1270 = vpop.f32.mrb[0].mxu0
        %v1271 = vpop.f32.mrb[0].mxu0
        %1272 = vdwg.mxu0
        %v1274 = vsel %vm1226, %v1219, 0
        %v1277 = vsel %vm1226, %v1223, 0
        %1279 = vmatprep.subr.bf16.mxu0 0
        %1280 = vmatpush1.bf16.xpose.msra.mxu0 %v1277
        %1281 = vmatprep.subr.bf16.mxu0 0
        %1282 = vmatpush1.bf16.xpose.msra.mxu0 0
        %1283 = vmatprep.subr.bf16.mxu0 0
        %1284 = vmatpush1.bf16.xpose.msra.mxu0 0
        %1285 = vmatprep.subr.bf16.mxu0 0
        %1286 = vmatpush1.bf16.xpose.msra.mxu0 0
        %1287 = vmatprep.subr.bf16.mxu0 0
        %1288 = vmatpush1.bf16.xpose.msra.mxu0 0
        %1289 = vmatprep.subr.bf16.mxu0 0
        %1290 = vmatpush1.bf16.xpose.msra.mxu0 0
        %1291 = vmatprep.subr.bf16.mxu0 0
        %1292 = vmatpush1.bf16.xpose.msra.mxu0 0
        %1293 = vmatprep.subr.bf16.mxu0 0
        %1294 = vmatpush1.bf16.xpose.msra.mxu0 0
        %1295 = vmatprep.subr.bf16.mxu0 0
        %1296 = vmatpush1.bf16.xpose.msra.mxu0 0
        %1297 = vmatprep.subr.bf16.mxu0 0
        %1298 = vmatpush1.bf16.xpose.msra.mxu0 0
        %1299 = vmatprep.subr.bf16.mxu0 0
        %1300 = vmatpush1.bf16.xpose.msra.mxu0 0
        %1301 = vmatprep.subr.bf16.mxu0 0
        %1302 = vmatpush1.bf16.xpose.msra.mxu0 0
        %1303 = vmatprep.subr.bf16.mxu0 0
        %1304 = vmatpush1.bf16.xpose.msra.mxu0 0
        %1305 = vmatprep.subr.bf16.mxu0 0
        %1306 = vmatpush1.bf16.xpose.msra.mxu0 0
        %1307 = vmatprep.subr.bf16.mxu0 0
        %1308 = vmatpush1.bf16.xpose.msra.mxu0 0
        %1309 = vmatprep.subr.bf16.mxu0 0
        %1310 = vmatpush1.bf16.xpose.msra.mxu0 0
        %1311 = vmatprep.mubr.bf16.mxu0 0
        %1312 = vmatmul.mubr.bf16.gmra.mrb[0].mxu0 %v1274
        %v1313 = vpop.f32.mrb[0].mxu0
        %v1314 = vadd.f32 0.0, %v1313
        %v1315 = vpop.f32.mrb[0].mxu0
        %v1316 = vpop.f32.mrb[0].mxu0
        %v1317 = vpop.f32.mrb[0].mxu0
        %1318 = vdwg.mxu0
        %v1320 = vsel %vm1226, %v1220, 0
        %v1323 = vsel %vm1226, %v1224, 0
        %1325 = vmatprep.subr.bf16.mxu0 0
        %1326 = vmatpush1.bf16.xpose.msra.mxu0 %v1323
        %1327 = vmatprep.subr.bf16.mxu0 0
        %1328 = vmatpush1.bf16.xpose.msra.mxu0 0
        %1329 = vmatprep.subr.bf16.mxu0 0
        %1330 = vmatpush1.bf16.xpose.msra.mxu0 0
        %1331 = vmatprep.subr.bf16.mxu0 0
        %1332 = vmatpush1.bf16.xpose.msra.mxu0 0
        %1333 = vmatprep.subr.bf16.mxu0 0
        %1334 = vmatpush1.bf16.xpose.msra.mxu0 0
        %1335 = vmatprep.subr.bf16.mxu0 0
        %1336 = vmatpush1.bf16.xpose.msra.mxu0 0
        %1337 = vmatprep.subr.bf16.mxu0 0
        %1338 = vmatpush1.bf16.xpose.msra.mxu0 0
        %1339 = vmatprep.subr.bf16.mxu0 0
        %1340 = vmatpush1.bf16.xpose.msra.mxu0 0
        %1341 = vmatprep.subr.bf16.mxu0 0
        %1342 = vmatpush1.bf16.xpose.msra.mxu0 0
        %1343 = vmatprep.subr.bf16.mxu0 0
        %1344 = vmatpush1.bf16.xpose.msra.mxu0 0
        %1345 = vmatprep.subr.bf16.mxu0 0
        %1346 = vmatpush1.bf16.xpose.msra.mxu0 0
        %1347 = vmatprep.subr.bf16.mxu0 0
        %1348 = vmatpush1.bf16.xpose.msra.mxu0 0
        %1349 = vmatprep.subr.bf16.mxu0 0
        %1350 = vmatpush1.bf16.xpose.msra.mxu0 0
        %1351 = vmatprep.subr.bf16.mxu0 0
        %1352 = vmatpush1.bf16.xpose.msra.mxu0 0
        %1353 = vmatprep.subr.bf16.mxu0 0
        %1354 = vmatpush1.bf16.xpose.msra.mxu0 0
        %1355 = vmatprep.subr.bf16.mxu0 0
        %1356 = vmatpush1.bf16.xpose.msra.mxu0 0
        %1357 = vmatprep.mubr.bf16.mxu0 0
        %1358 = vmatmul.mubr.bf16.gmra.mrb[0].mxu0 %v1320
        %v1359 = vpop.f32.mrb[0].mxu0
        %v1360 = vadd.f32 0.0, %v1359
        %v1361 = vpop.f32.mrb[0].mxu0
        %v1362 = vpop.f32.mrb[0].mxu0
        %v1363 = vpop.f32.mrb[0].mxu0
        %1364 = vdwg.mxu0
        %v1366 = vsel %vm1226, %v1221, 0
        %v1369 = vsel %vm1226, %v1225, 0
        %1371 = vmatprep.subr.bf16.mxu0 0
        %1372 = vmatpush1.bf16.xpose.msra.mxu0 %v1369
        %1373 = vmatprep.subr.bf16.mxu0 0
        %1374 = vmatpush1.bf16.xpose.msra.mxu0 0
        %1375 = vmatprep.subr.bf16.mxu0 0
        %1376 = vmatpush1.bf16.xpose.msra.mxu0 0
        %1377 = vmatprep.subr.bf16.mxu0 0
        %1378 = vmatpush1.bf16.xpose.msra.mxu0 0
        %1379 = vmatprep.subr.bf16.mxu0 0
        %1380 = vmatpush1.bf16.xpose.msra.mxu0 0
        %1381 = vmatprep.subr.bf16.mxu0 0
        %1382 = vmatpush1.bf16.xpose.msra.mxu0 0
        %1383 = vmatprep.subr.bf16.mxu0 0
        %1384 = vmatpush1.bf16.xpose.msra.mxu0 0
        %1385 = vmatprep.subr.bf16.mxu0 0
        %1386 = vmatpush1.bf16.xpose.msra.mxu0 0
        %1387 = vmatprep.subr.bf16.mxu0 0
        %1388 = vmatpush1.bf16.xpose.msra.mxu0 0
        %1389 = vmatprep.subr.bf16.mxu0 0
        %1390 = vmatpush1.bf16.xpose.msra.mxu0 0
        %1391 = vmatprep.subr.bf16.mxu0 0
        %1392 = vmatpush1.bf16.xpose.msra.mxu0 0
        %1393 = vmatprep.subr.bf16.mxu0 0
        %1394 = vmatpush1.bf16.xpose.msra.mxu0 0
        %1395 = vmatprep.subr.bf16.mxu0 0
        %1396 = vmatpush1.bf16.xpose.msra.mxu0 0
        %1397 = vmatprep.subr.bf16.mxu0 0
        %1398 = vmatpush1.bf16.xpose.msra.mxu0 0
        %1399 = vmatprep.subr.bf16.mxu0 0
        %1400 = vmatpush1.bf16.xpose.msra.mxu0 0
        %1401 = vmatprep.subr.bf16.mxu0 0
        %1402 = vmatpush1.bf16.xpose.msra.mxu0 0
        %1403 = vmatprep.mubr.bf16.mxu0 0
        %1404 = vmatmul.mubr.bf16.gmra.mrb[0].mxu0 %v1366
        %v1405 = vpop.f32.mrb[0].mxu0
        %v1406 = vadd.f32 0.0, %v1405
        %v1407 = vpop.f32.mrb[0].mxu0
        %v1408 = vpop.f32.mrb[0].mxu0
        %v1409 = vpop.f32.mrb[0].mxu0
        %1410 = vdwg.mxu0
        %v1411 = vmul.f32 %v1268, 0.35355338
        %v1412 = vmul.f32 %v1314, 0.35355338
        %v1413 = vmul.f32 %v1360, 0.35355338
        %v1414 = vmul.f32 %v1406, 0.35355338
        %v1415 = vsel %vm1226, %v1411, -inf
        %1416 = vmax.xlane.f32.xlu0 %v1415
        %v1417 = vpop.xlane.xlu0 %1416
        %v1418 = vsel %vm1226, %v1412, -inf
        %1419 = vmax.xlane.f32.xlu0 %v1418
        %v1420 = vpop.xlane.xlu0 %1419
        %v1421 = vsel %vm1226, %v1413, -inf
        %1422 = vmax.xlane.f32.xlu0 %v1421
        %v1423 = vpop.xlane.xlu0 %1422
        %v1424 = vsel %vm1226, %v1414, -inf
        %1425 = vmax.xlane.f32.xlu0 %v1424
        %v1426 = vpop.xlane.xlu0 %1425
        %v1427 = vsub.f32 %v1411, %v1417
        %v1428 = vsub.f32 %v1412, %v1420
        %v1429 = vsub.f32 %v1413, %v1423
        %v1430 = vsub.f32 %v1414, %v1426
        %v1431 = vmul.f32 %v1427, 1.442695
        %v1432 = vpow.pop %v1431
        %v1433 = vmul.f32 %v1428, 1.442695
        %v1434 = vpow.pop %v1433
        %v1435 = vmul.f32 %v1429, 1.442695
        %v1436 = vpow.pop %v1435
        %v1437 = vmul.f32 %v1430, 1.442695
        %v1438 = vpow.pop %v1437
        %v1439 = vsel %vm1226, %v1432, 0.0
        %1440 = vadd.xlane.f32.xlu0 %v1439
        %v1441 = vpop.xlane.xlu0 %1440
        %v1442 = vsel %vm1226, %v1434, 0.0
        %1443 = vadd.xlane.f32.xlu0 %v1442
        %v1444 = vpop.xlane.xlu0 %1443
        %v1445 = vsel %vm1226, %v1436, 0.0
        %1446 = vadd.xlane.f32.xlu0 %v1445
        %v1447 = vpop.xlane.xlu0 %1446
        %v1448 = vsel %vm1226, %v1438, 0.0
        %1449 = vadd.xlane.f32.xlu0 %v1448
        %v1450 = vpop.xlane.xlu0 %1449
        %v1451 = vrcp.pop %v1441
        %v1452 = vrcp.pop %v1444
        %v1453 = vrcp.pop %v1447
        %v1454 = vrcp.pop %v1450
        %v1455 = vmul.f32 %v1432, %v1451
        %v1456 = vmul.f32 %v1434, %v1452
        %v1457 = vmul.f32 %v1436, %v1453
        %v1458 = vmul.f32 %v1438, %v1454
        %v1459 = vpack.c.bf16 %v1455, %v1455
        %v1460 = vpack.c.bf16 %v1456, %v1456
        %v1461 = vpack.c.bf16 %v1457, %v1457
        %v1462 = vpack.c.bf16 %v1458, %v1458
        %v1463 = vpack.c.bf16 %v1214, %v1214
        %v1464 = vpack.c.bf16 %v1215, %v1215
        %v1465 = vpack.c.bf16 %v1216, %v1216
        %v1466 = vpack.c.bf16 %v1217, %v1217
        %v1468 = vsel %vm1226, %v1459, 0
        %vm1470 = vcmask 1043456
        %v1472 = vsel %vm1470, %v1463, 0
        %1474 = vmatprep.subr.bf16.mxu0 0
        %1475 = vmatpush1.bf16.msra.mxu0 %v1472
        %1476 = vmatprep.subr.bf16.mxu0 0
        %1477 = vmatpush1.bf16.msra.mxu0 0
        %1478 = vmatprep.subr.bf16.mxu0 0
        %1479 = vmatpush1.bf16.msra.mxu0 0
        %1480 = vmatprep.subr.bf16.mxu0 0
        %1481 = vmatpush1.bf16.msra.mxu0 0
        %1482 = vmatprep.subr.bf16.mxu0 0
        %1483 = vmatpush1.bf16.msra.mxu0 0
        %1484 = vmatprep.subr.bf16.mxu0 0
        %1485 = vmatpush1.bf16.msra.mxu0 0
        %1486 = vmatprep.subr.bf16.mxu0 0
        %1487 = vmatpush1.bf16.msra.mxu0 0
        %1488 = vmatprep.subr.bf16.mxu0 0
        %1489 = vmatpush1.bf16.msra.mxu0 0
        %1490 = vmatprep.subr.bf16.mxu0 0
        %1491 = vmatpush1.bf16.msra.mxu0 0
        %1492 = vmatprep.subr.bf16.mxu0 0
        %1493 = vmatpush1.bf16.msra.mxu0 0
        %1494 = vmatprep.subr.bf16.mxu0 0
        %1495 = vmatpush1.bf16.msra.mxu0 0
        %1496 = vmatprep.subr.bf16.mxu0 0
        %1497 = vmatpush1.bf16.msra.mxu0 0
        %1498 = vmatprep.subr.bf16.mxu0 0
        %1499 = vmatpush1.bf16.msra.mxu0 0
        %1500 = vmatprep.subr.bf16.mxu0 0
        %1501 = vmatpush1.bf16.msra.mxu0 0
        %1502 = vmatprep.subr.bf16.mxu0 0
        %1503 = vmatpush1.bf16.msra.mxu0 0
        %1504 = vmatprep.subr.bf16.mxu0 0
        %1505 = vmatpush1.bf16.msra.mxu0 0
        %1506 = vmatprep.mubr.bf16.mxu0 0
        %1507 = vmatmul.mubr.bf16.gmra.mrb[0].mxu0 %v1468
        %v1508 = vpop.f32.mrb[0].mxu0
        %v1509 = vadd.f32 0.0, %v1508
        %v1510 = vpop.f32.mrb[0].mxu0
        %v1511 = vpop.f32.mrb[0].mxu0
        %v1512 = vpop.f32.mrb[0].mxu0
        %1513 = vdwg.mxu0
        %v1515 = vsel %vm1226, %v1460, 0
        %v1518 = vsel %vm1470, %v1464, 0
        %1520 = vmatprep.subr.bf16.mxu0 0
        %1521 = vmatpush1.bf16.msra.mxu0 %v1518
        %1522 = vmatprep.subr.bf16.mxu0 0
        %1523 = vmatpush1.bf16.msra.mxu0 0
        %1524 = vmatprep.subr.bf16.mxu0 0
        %1525 = vmatpush1.bf16.msra.mxu0 0
        %1526 = vmatprep.subr.bf16.mxu0 0
        %1527 = vmatpush1.bf16.msra.mxu0 0
        %1528 = vmatprep.subr.bf16.mxu0 0
        %1529 = vmatpush1.bf16.msra.mxu0 0
        %1530 = vmatprep.subr.bf16.mxu0 0
        %1531 = vmatpush1.bf16.msra.mxu0 0
        %1532 = vmatprep.subr.bf16.mxu0 0
        %1533 = vmatpush1.bf16.msra.mxu0 0
        %1534 = vmatprep.subr.bf16.mxu0 0
        %1535 = vmatpush1.bf16.msra.mxu0 0
        %1536 = vmatprep.subr.bf16.mxu0 0
        %1537 = vmatpush1.bf16.msra.mxu0 0
        %1538 = vmatprep.subr.bf16.mxu0 0
        %1539 = vmatpush1.bf16.msra.mxu0 0
        %1540 = vmatprep.subr.bf16.mxu0 0
        %1541 = vmatpush1.bf16.msra.mxu0 0
        %1542 = vmatprep.subr.bf16.mxu0 0
        %1543 = vmatpush1.bf16.msra.mxu0 0
        %1544 = vmatprep.subr.bf16.mxu0 0
        %1545 = vmatpush1.bf16.msra.mxu0 0
        %1546 = vmatprep.subr.bf16.mxu0 0
        %1547 = vmatpush1.bf16.msra.mxu0 0
        %1548 = vmatprep.subr.bf16.mxu0 0
        %1549 = vmatpush1.bf16.msra.mxu0 0
        %1550 = vmatprep.subr.bf16.mxu0 0
        %1551 = vmatpush1.bf16.msra.mxu0 0
        %1552 = vmatprep.mubr.bf16.mxu0 0
        %1553 = vmatmul.mubr.bf16.gmra.mrb[0].mxu0 %v1515
        %v1554 = vpop.f32.mrb[0].mxu0
        %v1555 = vadd.f32 0.0, %v1554
        %v1556 = vpop.f32.mrb[0].mxu0
        %v1557 = vpop.f32.mrb[0].mxu0
        %v1558 = vpop.f32.mrb[0].mxu0
        %1559 = vdwg.mxu0
        %v1561 = vsel %vm1226, %v1461, 0
        %v1564 = vsel %vm1470, %v1465, 0
        %1566 = vmatprep.subr.bf16.mxu0 0
        %1567 = vmatpush1.bf16.msra.mxu0 %v1564
        %1568 = vmatprep.subr.bf16.mxu0 0
        %1569 = vmatpush1.bf16.msra.mxu0 0
        %1570 = vmatprep.subr.bf16.mxu0 0
        %1571 = vmatpush1.bf16.msra.mxu0 0
        %1572 = vmatprep.subr.bf16.mxu0 0
        %1573 = vmatpush1.bf16.msra.mxu0 0
        %1574 = vmatprep.subr.bf16.mxu0 0
        %1575 = vmatpush1.bf16.msra.mxu0 0
        %1576 = vmatprep.subr.bf16.mxu0 0
        %1577 = vmatpush1.bf16.msra.mxu0 0
        %1578 = vmatprep.subr.bf16.mxu0 0
        %1579 = vmatpush1.bf16.msra.mxu0 0
        %1580 = vmatprep.subr.bf16.mxu0 0
        %1581 = vmatpush1.bf16.msra.mxu0 0
        %1582 = vmatprep.subr.bf16.mxu0 0
        %1583 = vmatpush1.bf16.msra.mxu0 0
        %1584 = vmatprep.subr.bf16.mxu0 0
        %1585 = vmatpush1.bf16.msra.mxu0 0
        %1586 = vmatprep.subr.bf16.mxu0 0
        %1587 = vmatpush1.bf16.msra.mxu0 0
        %1588 = vmatprep.subr.bf16.mxu0 0
        %1589 = vmatpush1.bf16.msra.mxu0 0
        %1590 = vmatprep.subr.bf16.mxu0 0
        %1591 = vmatpush1.bf16.msra.mxu0 0
        %1592 = vmatprep.subr.bf16.mxu0 0
        %1593 = vmatpush1.bf16.msra.mxu0 0
        %1594 = vmatprep.subr.bf16.mxu0 0
        %1595 = vmatpush1.bf16.msra.mxu0 0
        %1596 = vmatprep.subr.bf16.mxu0 0
        %1597 = vmatpush1.bf16.msra.mxu0 0
        %1598 = vmatprep.mubr.bf16.mxu0 0
        %1599 = vmatmul.mubr.bf16.gmra.mrb[0].mxu0 %v1561
        %v1600 = vpop.f32.mrb[0].mxu0
        %v1601 = vadd.f32 0.0, %v1600
        %v1602 = vpop.f32.mrb[0].mxu0
        %v1603 = vpop.f32.mrb[0].mxu0
        %v1604 = vpop.f32.mrb[0].mxu0
        %1605 = vdwg.mxu0
        %v1607 = vsel %vm1226, %v1462, 0
        %v1610 = vsel %vm1470, %v1466, 0
        %1612 = vmatprep.subr.bf16.mxu0 0
        %1613 = vmatpush1.bf16.msra.mxu0 %v1610
        %1614 = vmatprep.subr.bf16.mxu0 0
        %1615 = vmatpush1.bf16.msra.mxu0 0
        %1616 = vmatprep.subr.bf16.mxu0 0
        %1617 = vmatpush1.bf16.msra.mxu0 0
        %1618 = vmatprep.subr.bf16.mxu0 0
        %1619 = vmatpush1.bf16.msra.mxu0 0
        %1620 = vmatprep.subr.bf16.mxu0 0
        %1621 = vmatpush1.bf16.msra.mxu0 0
        %1622 = vmatprep.subr.bf16.mxu0 0
        %1623 = vmatpush1.bf16.msra.mxu0 0
        %1624 = vmatprep.subr.bf16.mxu0 0
        %1625 = vmatpush1.bf16.msra.mxu0 0
        %1626 = vmatprep.subr.bf16.mxu0 0
        %1627 = vmatpush1.bf16.msra.mxu0 0
        %1628 = vmatprep.subr.bf16.mxu0 0
        %1629 = vmatpush1.bf16.msra.mxu0 0
        %1630 = vmatprep.subr.bf16.mxu0 0
        %1631 = vmatpush1.bf16.msra.mxu0 0
        %1632 = vmatprep.subr.bf16.mxu0 0
        %1633 = vmatpush1.bf16.msra.mxu0 0
        %1634 = vmatprep.subr.bf16.mxu0 0
        %1635 = vmatpush1.bf16.msra.mxu0 0
        %1636 = vmatprep.subr.bf16.mxu0 0
        %1637 = vmatpush1.bf16.msra.mxu0 0
        %1638 = vmatprep.subr.bf16.mxu0 0
        %1639 = vmatpush1.bf16.msra.mxu0 0
        %1640 = vmatprep.subr.bf16.mxu0 0
        %1641 = vmatpush1.bf16.msra.mxu0 0
        %1642 = vmatprep.subr.bf16.mxu0 0
        %1643 = vmatpush1.bf16.msra.mxu0 0
        %1644 = vmatprep.mubr.bf16.mxu0 0
        %1645 = vmatmul.mubr.bf16.gmra.mrb[0].mxu0 %v1607
        %v1646 = vpop.f32.mrb[0].mxu0
        %v1647 = vadd.f32 0.0, %v1646
        %v1648 = vpop.f32.mrb[0].mxu0
        %v1649 = vpop.f32.mrb[0].mxu0
        %v1650 = vpop.f32.mrb[0].mxu0
        %1651 = vdwg.mxu0
        %v1652 = vcombine.low %v1509, %v1601
        %v1653 = vcombine.high %v1509, %v1601
        %v1655 = vunpack.c.l.s4 1983009808
        %v1656 = vunpack.c.0.s8 %v1655
        %v1657 = vlaneseq
        %v1658 = vshrl.u32 %v1657, 7
        %v1659 = vsub.s32 %v1656, %v1658
        %v1660 = vrot.slane %v1652, %v1659
        %v1662 = vunpack.c.l.s4 1983009808
        %v1663 = vunpack.c.0.s8 %v1662
        %v1664 = vlaneseq
        %v1665 = vshrl.u32 %v1664, 7
        %v1666 = vsub.s32 %v1663, %v1665
        %v1667 = vrot.slane %v1653, %v1666
        %v1668 = vcombine.low %v1555, %v1647
        %v1669 = vcombine.high %v1555, %v1647
        %v1671 = vunpack.c.l.s4 1983009808
        %v1672 = vunpack.c.0.s8 %v1671
        %v1673 = vlaneseq
        %v1674 = vshrl.u32 %v1673, 7
        %v1675 = vsub.s32 %v1672, %v1674
        %v1676 = vrot.slane %v1668, %v1675
        %v1678 = vunpack.c.l.s4 1983009808
        %v1679 = vunpack.c.0.s8 %v1678
        %v1680 = vlaneseq
        %v1681 = vshrl.u32 %v1680, 7
        %v1682 = vsub.s32 %v1679, %v1681
        %v1683 = vrot.slane %v1669, %v1682
        %v1684 = vcombine.low %v1660, %v1676
        %v1685 = vcombine.high %v1660, %v1676
        %v1687 = vunpack.c.l.s4 1934713408
        %v1688 = vunpack.c.0.s8 %v1687
        %v1689 = vlaneseq
        %v1690 = vshrl.u32 %v1689, 7
        %v1691 = vsub.s32 %v1688, %v1690
        %v1692 = vrot.slane %v1684, %v1691
        %v1694 = vunpack.c.l.s4 1934713408
        %v1695 = vunpack.c.0.s8 %v1694
        %v1696 = vlaneseq
        %v1697 = vshrl.u32 %v1696, 7
        %v1698 = vsub.s32 %v1695, %v1697
        %v1699 = vrot.slane %v1685, %v1698
        %v1700 = vcombine.low %v1667, %v1683
        %v1701 = vcombine.high %v1667, %v1683
        %v1703 = vunpack.c.l.s4 1934713408
        %v1704 = vunpack.c.0.s8 %v1703
        %v1705 = vlaneseq
        %v1706 = vshrl.u32 %v1705, 7
        %v1707 = vsub.s32 %v1704, %v1706
        %v1708 = vrot.slane %v1700, %v1707
        %v1710 = vunpack.c.l.s4 1934713408
        %v1711 = vunpack.c.0.s8 %v1710
        %v1712 = vlaneseq
        %v1713 = vshrl.u32 %v1712, 7
        %v1714 = vsub.s32 %v1711, %v1713
        %v1715 = vrot.slane %v1701, %v1714
        %v1716 = vcombine.high %v1692, 0.0
        %v1717 = vcombine.high %v1699, 0.0
        %v1718 = vcombine.high %v1708, 0.0
        %v1719 = vcombine.high %v1715, 0.0
        %v1720 = vcombine.low %v1692, %v1699
        %v1722 = vunpack.c.l.s4 1983009808
        %v1723 = vunpack.c.0.s8 %v1722
        %v1724 = vlaneseq
        %v1725 = vshrl.u32 %v1724, 7
        %v1726 = vsub.s32 %v1723, %v1725
        %v1727 = vrot.slane %v1720, %v1726
        %v1728 = vcombine.low %v1716, %v1717
        %v1730 = vunpack.c.l.s4 1983009808
        %v1731 = vunpack.c.0.s8 %v1730
        %v1732 = vlaneseq
        %v1733 = vshrl.u32 %v1732, 7
        %v1734 = vsub.s32 %v1731, %v1733
        %v1735 = vrot.slane %v1728, %v1734
        %v1736 = vcombine.low %v1708, %v1715
        %v1738 = vunpack.c.l.s4 1983009808
        %v1739 = vunpack.c.0.s8 %v1738
        %v1740 = vlaneseq
        %v1741 = vshrl.u32 %v1740, 7
        %v1742 = vsub.s32 %v1739, %v1741
        %v1743 = vrot.slane %v1736, %v1742
        %v1744 = vcombine.low %v1718, %v1719
        %v1746 = vunpack.c.l.s4 1983009808
        %v1747 = vunpack.c.0.s8 %v1746
        %v1748 = vlaneseq
        %v1749 = vshrl.u32 %v1748, 7
        %v1750 = vsub.s32 %v1747, %v1749
        %v1751 = vrot.slane %v1744, %v1750
        %v1752 = vcombine.low %v1727, %v1735
        %v1753 = vcombine.high %v1727, %v1735
        %v1755 = vunpack.c.l.s4 1934713408
        %v1756 = vunpack.c.0.s8 %v1755
        %v1757 = vlaneseq
        %v1758 = vshrl.u32 %v1757, 7
        %v1759 = vsub.s32 %v1756, %v1758
        %v1760 = vrot.slane %v1752, %v1759
        %v1762 = vunpack.c.l.s4 1934713408
        %v1763 = vunpack.c.0.s8 %v1762
        %v1764 = vlaneseq
        %v1765 = vshrl.u32 %v1764, 7
        %v1766 = vsub.s32 %v1763, %v1765
        %v1767 = vrot.slane %v1753, %v1766
        %v1768 = vcombine.low %v1743, %v1751
        %v1769 = vcombine.high %v1743, %v1751
        %v1771 = vunpack.c.l.s4 1934713408
        %v1772 = vunpack.c.0.s8 %v1771
        %v1773 = vlaneseq
        %v1774 = vshrl.u32 %v1773, 7
        %v1775 = vsub.s32 %v1772, %v1774
        %v1776 = vrot.slane %v1768, %v1775
        %v1778 = vunpack.c.l.s4 1934713408
        %v1779 = vunpack.c.0.s8 %v1778
        %v1780 = vlaneseq
        %v1781 = vshrl.u32 %v1780, 7
        %v1782 = vsub.s32 %v1779, %v1781
        %v1783 = vrot.slane %v1769, %v1782
        %v1784 = vcombine.low %v1760, %v1776
        %v1785 = vcombine.high %v1760, %v1776
        %v1786 = vcombine.low %v1767, %v1783
        %v1787 = vcombine.high %v1767, %v1783
        %1789 = vrot.lane.b32.xlu0 %v1785, 8
        %v1790 = vpop.permute.xlu0 %1789
        %1793 = vrot.lane.b32.xlu0 %v1786, 16
        %v1794 = vpop.permute.xlu0 %1793
        %1797 = vrot.lane.b32.xlu0 %v1787, 24
        %v1798 = vpop.permute.xlu0 %1797
        %v1800 = vsel %vm1226, %v1784, %v1790
        %vm1801 = vcmask 130048
        %v1802 = vsel %vm1801, %v1800, %v1794
        %vm1803 = vcmask 195584
        %v1804 = vsel %vm1803, %v1802, %v1798
        %v1805 = vpack.c.bf16 %v1804, %v1804
        %v1806 = vld [vmem:[#allocation5] sm:$0xff]
        %v1807 = vld [vmem:[#allocation5 + $0x8] sm:$0xff]
        %v1808 = vld [vmem:[#allocation5 + $0x10] sm:$0xff]
        %v1809 = vld [vmem:[#allocation5 + $0x18] sm:$0xff]
        %v1810 = vpack.c.bf16 %v1807, %v1806
        %v1811 = vpack.c.bf16 %v1809, %v1808
        %v1812 = vld [vmem:[%s8] sm:$0x1]
        %v1814 = vlaneseq
        %v1815 = vshrl.u32 %v1814, 7
        %v1816 = vsub.s32 0, %v1815
        %v1817 = vrot.slane %v1812, %v1816
        %v1820 = vsel %vm626, %v1805, 0
        %1822 = vmatprep.subr.bf16.mxu0 0
        %1823 = vmatpush1.bf16.msra.mxu0 %v1810
        %1824 = vmatprep.subr.bf16.mxu0 0
        %1825 = vmatpush1.bf16.msra.mxu0 %v1811
        %1826 = vmatprep.subr.bf16.mxu0 0
        %1827 = vmatpush1.bf16.msra.mxu0 0
        %1828 = vmatprep.subr.bf16.mxu0 0
        %1829 = vmatpush1.bf16.msra.mxu0 0
        %1830 = vmatprep.subr.bf16.mxu0 0
        %1831 = vmatpush1.bf16.msra.mxu0 0
        %1832 = vmatprep.subr.bf16.mxu0 0
        %1833 = vmatpush1.bf16.msra.mxu0 0
        %1834 = vmatprep.subr.bf16.mxu0 0
        %1835 = vmatpush1.bf16.msra.mxu0 0
        %1836 = vmatprep.subr.bf16.mxu0 0
        %1837 = vmatpush1.bf16.msra.mxu0 0
        %1838 = vmatprep.subr.bf16.mxu0 0
        %1839 = vmatpush1.bf16.msra.mxu0 0
        %1840 = vmatprep.subr.bf16.mxu0 0
        %1841 = vmatpush1.bf16.msra.mxu0 0
        %1842 = vmatprep.subr.bf16.mxu0 0
        %1843 = vmatpush1.bf16.msra.mxu0 0
        %1844 = vmatprep.subr.bf16.mxu0 0
        %1845 = vmatpush1.bf16.msra.mxu0 0
        %1846 = vmatprep.subr.bf16.mxu0 0
        %1847 = vmatpush1.bf16.msra.mxu0 0
        %1848 = vmatprep.subr.bf16.mxu0 0
        %1849 = vmatpush1.bf16.msra.mxu0 0
        %1850 = vmatprep.subr.bf16.mxu0 0
        %1851 = vmatpush1.bf16.msra.mxu0 0
        %1852 = vmatprep.subr.bf16.mxu0 0
        %1853 = vmatpush1.bf16.msra.mxu0 0
        %1854 = vmatprep.mubr.bf16.mxu0 0
        %1855 = vmatmul.mubr.bf16.gmra.mrb[0].mxu0 %v1820
        %v1856 = vpop.f32.mrb[0].mxu0
        %v1857 = vadd.f32 %v1817, %v1856
        %v1858 = vpop.f32.mrb[0].mxu0
        %v1859 = vpop.f32.mrb[0].mxu0
        %v1860 = vpop.f32.mrb[0].mxu0
        %1861 = vdwg.mxu0
        %v1862 = vadd.f32 %v611, %v1857
        %v1863 = vsel %vm626, %v1862, 0.0
        %1864 = vadd.xlane.f32.xlu0 %v1863
        %v1865 = vpop.xlane.xlu0 %1864
        %v1866 = vrcp.pop 32.0
        %v1867 = vmul.f32 %v1865, %v1866
        %v1868 = vsub.f32 %v1862, %v1867
        %v1869 = vmul.f32 %v1868, %v1868
        %v1870 = vsel %vm626, %v1869, 0.0
        %1871 = vadd.xlane.f32.xlu0 %v1870
        %v1872 = vpop.xlane.xlu0 %1871
        %v1873 = vmul.f32 %v1872, %v1866
        %v1874 = vadd.f32 %v1873, 1e-05
        %v1875 = vrsqrt.pop %v1874
        %v1876 = vmul.f32 %v1868, %v1875
        %v1877 = vld [vmem:[%s9] sm:$0x1]
        %v1879 = vlaneseq
        %v1880 = vshrl.u32 %v1879, 7
        %v1881 = vsub.s32 0, %v1880
        %v1882 = vrot.slane %v1877, %v1881
        %v1884 = vmul.f32 %v1876, %v1882
        %v1885 = vld [vmem:[%s10] sm:$0x1]
        %v1887 = vlaneseq
        %v1888 = vshrl.u32 %v1887, 7
        %v1889 = vsub.s32 0, %v1888
        %v1890 = vrot.slane %v1885, %v1889
        %v1892 = vadd.f32 %v1884, %v1890
        %v1893 = vpack.c.bf16 %v1892, %v1892
        %v1894 = vld [vmem:[#allocation7] sm:$0xff]
        %v1895 = vld [vmem:[#allocation7 + $0x8] sm:$0xff]
        %v1896 = vld [vmem:[#allocation7 + $0x10] sm:$0xff]
        %v1897 = vld [vmem:[#allocation7 + $0x18] sm:$0xff]
        %v1898 = vpack.c.bf16 %v1895, %v1894
        %v1899 = vpack.c.bf16 %v1897, %v1896
        %v1900 = vld [vmem:[%s12] sm:$0x1]
        %v1902 = vlaneseq
        %v1903 = vshrl.u32 %v1902, 7
        %v1904 = vsub.s32 0, %v1903
        %v1905 = vrot.slane %v1900, %v1904
        %v1908 = vsel %vm626, %v1893, 0
        %1910 = vmatprep.subr.bf16.mxu0 0
        %1911 = vmatpush1.bf16.msra.mxu0 %v1898
        %1912 = vmatprep.subr.bf16.mxu0 0
        %1913 = vmatpush1.bf16.msra.mxu0 %v1899
        %1914 = vmatprep.subr.bf16.mxu0 0
        %1915 = vmatpush1.bf16.msra.mxu0 0
        %1916 = vmatprep.subr.bf16.mxu0 0
        %1917 = vmatpush1.bf16.msra.mxu0 0
        %1918 = vmatprep.subr.bf16.mxu0 0
        %1919 = vmatpush1.bf16.msra.mxu0 0
        %1920 = vmatprep.subr.bf16.mxu0 0
        %1921 = vmatpush1.bf16.msra.mxu0 0
        %1922 = vmatprep.subr.bf16.mxu0 0
        %1923 = vmatpush1.bf16.msra.mxu0 0
        %1924 = vmatprep.subr.bf16.mxu0 0
        %1925 = vmatpush1.bf16.msra.mxu0 0
        %1926 = vmatprep.subr.bf16.mxu0 0
        %1927 = vmatpush1.bf16.msra.mxu0 0
        %1928 = vmatprep.subr.bf16.mxu0 0
        %1929 = vmatpush1.bf16.msra.mxu0 0
        %1930 = vmatprep.subr.bf16.mxu0 0
        %1931 = vmatpush1.bf16.msra.mxu0 0
        %1932 = vmatprep.subr.bf16.mxu0 0
        %1933 = vmatpush1.bf16.msra.mxu0 0
        %1934 = vmatprep.subr.bf16.mxu0 0
        %1935 = vmatpush1.bf16.msra.mxu0 0
        %1936 = vmatprep.subr.bf16.mxu0 0
        %1937 = vmatpush1.bf16.msra.mxu0 0
        %1938 = vmatprep.subr.bf16.mxu0 0
        %1939 = vmatpush1.bf16.msra.mxu0 0
        %1940 = vmatprep.subr.bf16.mxu0 0
        %1941 = vmatpush1.bf16.msra.mxu0 0
        %1942 = vmatprep.mubr.bf16.mxu0 0
        %1943 = vmatmul.mubr.bf16.gmra.mrb[0].mxu0 %v1908
        %v1944 = vpop.f32.mrb[0].mxu0
        %v1945 = vadd.f32 %v1905, %v1944
        %v1946 = vpop.f32.mrb[0].mxu0
        %v1947 = vpop.f32.mrb[0].mxu0
        %v1948 = vpop.f32.mrb[0].mxu0
        %1949 = vdwg.mxu0
        %v1950 = vmax.f32 %v1945, 0.0
        %v1951 = vpack.c.bf16 %v1950, %v1950
        %v1952 = vld [vmem:[%s13] sm:$0xff]
        %v1953 = vld [vmem:[%s13 + $0x8] sm:$0xff]
        %v1954 = vld [vmem:[%s13 + $0x10] sm:$0xff]
        %v1955 = vld [vmem:[%s13 + $0x18] sm:$0xff]
        %v1956 = vld [vmem:[%s13 + $0x20] sm:$0xff]
        %v1957 = vld [vmem:[%s13 + $0x28] sm:$0xff]
        %v1958 = vld [vmem:[%s13 + $0x30] sm:$0xff]
        %v1959 = vld [vmem:[%s13 + $0x38] sm:$0xff]
        %v1960 = vpack.c.bf16 %v1953, %v1952
        %v1961 = vpack.c.bf16 %v1955, %v1954
        %v1962 = vpack.c.bf16 %v1957, %v1956
        %v1963 = vpack.c.bf16 %v1959, %v1958
        %v1964 = vld [vmem:[%s14] sm:$0x1]
        %v1966 = vlaneseq
        %v1967 = vshrl.u32 %v1966, 7
        %v1968 = vsub.s32 0, %v1967
        %v1969 = vrot.slane %v1964, %v1968
        %vm1971 = vcmask 523264
        %v1973 = vsel %vm1971, %v1951, 0
        %1975 = vmatprep.subr.bf16.mxu0 0
        %1976 = vmatpush1.bf16.msra.mxu0 %v1960
        %1977 = vmatprep.subr.bf16.mxu0 0
        %1978 = vmatpush1.bf16.msra.mxu0 %v1961
        %1979 = vmatprep.subr.bf16.mxu0 0
        %1980 = vmatpush1.bf16.msra.mxu0 %v1962
        %1981 = vmatprep.subr.bf16.mxu0 0
        %1982 = vmatpush1.bf16.msra.mxu0 %v1963
        %1983 = vmatprep.subr.bf16.mxu0 0
        %1984 = vmatpush1.bf16.msra.mxu0 0
        %1985 = vmatprep.subr.bf16.mxu0 0
        %1986 = vmatpush1.bf16.msra.mxu0 0
        %1987 = vmatprep.subr.bf16.mxu0 0
        %1988 = vmatpush1.bf16.msra.mxu0 0
        %1989 = vmatprep.subr.bf16.mxu0 0
        %1990 = vmatpush1.bf16.msra.mxu0 0
        %1991 = vmatprep.subr.bf16.mxu0 0
        %1992 = vmatpush1.bf16.msra.mxu0 0
        %1993 = vmatprep.subr.bf16.mxu0 0
        %1994 = vmatpush1.bf16.msra.mxu0 0
        %1995 = vmatprep.subr.bf16.mxu0 0
        %1996 = vmatpush1.bf16.msra.mxu0 0
        %1997 = vmatprep.subr.bf16.mxu0 0
        %1998 = vmatpush1.bf16.msra.mxu0 0
        %1999 = vmatprep.subr.bf16.mxu0 0
        %2000 = vmatpush1.bf16.msra.mxu0 0
        %2001 = vmatprep.subr.bf16.mxu0 0
        %2002 = vmatpush1.bf16.msra.mxu0 0
        %2003 = vmatprep.subr.bf16.mxu0 0
        %2004 = vmatpush1.bf16.msra.mxu0 0
        %2005 = vmatprep.subr.bf16.mxu0 0
        %2006 = vmatpush1.bf16.msra.mxu0 0
        %2007 = vmatprep.mubr.bf16.mxu0 0
        %2008 = vmatmul.mubr.bf16.gmra.mrb[0].mxu0 %v1973
        %v2009 = vpop.f32.mrb[0].mxu0
        %v2010 = vadd.f32 %v1969, %v2009
        %v2011 = vpop.f32.mrb[0].mxu0
        %v2012 = vpop.f32.mrb[0].mxu0
        %v2013 = vpop.f32.mrb[0].mxu0
        %2014 = vdwg.mxu0
        %v2015 = vadd.f32 %v1892, %v2010
        %v2016 = vsel %vm626, %v2015, 0.0
        %2017 = vadd.xlane.f32.xlu0 %v2016
        %v2018 = vpop.xlane.xlu0 %2017
        %v2019 = vmul.f32 %v2018, %v1866
        %v2020 = vsub.f32 %v2015, %v2019
        %v2021 = vmul.f32 %v2020, %v2020
        %v2022 = vsel %vm626, %v2021, 0.0
        %2023 = vadd.xlane.f32.xlu0 %v2022
        %v2024 = vpop.xlane.xlu0 %2023
        %v2025 = vmul.f32 %v2024, %v1866
        %v2026 = vadd.f32 %v2025, 1e-05
        %v2027 = vrsqrt.pop %v2026
        %v2028 = vmul.f32 %v2020, %v2027
        %v2029 = vld [vmem:[%s15] sm:$0x1]
        %v2031 = vlaneseq
        %v2032 = vshrl.u32 %v2031, 7
        %v2033 = vsub.s32 0, %v2032
        %v2034 = vrot.slane %v2029, %v2033
        %v2036 = vmul.f32 %v2028, %v2034
        %v2037 = vld [vmem:[%s16] sm:$0x1]
        %v2039 = vlaneseq
        %v2040 = vshrl.u32 %v2039, 7
        %v2041 = vsub.s32 0, %v2040
        %v2042 = vrot.slane %v2037, %v2041
        %v2044 = vadd.f32 %v2036, %v2042
        %2045 = vst.msk [vmem:[%s606] sm:$0xff] %vm626, %v2044
        %s2046 = sand.u32 %s419, 1
        %s2047 = scalar_lea.sflag [#allocation4], %s2046
        %s2048 = sand.u32 %s419, 1
        %s2049 = smul.addr %s2048, 8
        %s2050 = scalar_lea.vmem [#allocation8], %s2049
        // Predicated region
        $region101: #{tpu_custom_call.1} parent=87 // pred_check
          %p2051 = pneg %p429
        $region102: #{tpu_custom_call.1} parent=87 // pred_check_branch
          %2053 = sbr.rel (%p2051) target = $region104
        $region103: #{tpu_custom_call.1} parent=87 // pred_region
          %s2055 = ssub.s32 128, 128
          %2056 = vsyncadd %s2047, %s2055
          %s2057 = sadd.s32 %s40, %s39
          %s2058 = smul.addr %s2057, 128
          %s2059 = scalar_lea.hbm %s17, %s2058
          %s2061 = sshll.u32 %s2050, 4
          %s2062 = int_to_ptr.vmem [resolvable:$true] %s2061
          %2064 = dma.vmem_to_hbm [thread:$0]  %s2062, 128, %s2059, %s2047
        $region104: #{tpu_custom_call.1} parent=87 // pred_fallthru
          _
      $region88: #{tpu_custom_call.1} parent=5 // pred_fallthru
        _
      %p2065 = scmp.le.s32.totalorder 2, %s30
      // Predicated region
      $region105: #{tpu_custom_call.1} parent=5 // pred_check
        %p2066 = pneg %p2065
      $region106: #{tpu_custom_call.1} parent=5 // pred_check_branch
        %2068 = sbr.rel (%p2066) target = $region108
      $region107: #{tpu_custom_call.1} parent=5 // pred_region
        %s2069 = ssub.s32 %s30, 2
        // Predicated region
        $region109: #{tpu_custom_call.1} parent=107 // pred_check
          %p2070 = pneg %p435
        $region110: #{tpu_custom_call.1} parent=107 // pred_check_branch
          %2072 = sbr.rel (%p2070) target = $region112
        $region111: #{tpu_custom_call.1} parent=107 // pred_region
          %s2073 = sand.u32 %s420, 1
          %s2074 = scalar_lea.sflag [#allocation4], %s2073
          %s2075 = sand.u32 %s420, 1
          %s2076 = smul.addr %s2075, 8
          %s2077 = scalar_lea.vmem [#allocation8], %s2076
          %2078 = dma.done %s2074, 128
        $region112: #{tpu_custom_call.1} parent=107 // pred_fallthru
          _
      $region108: #{tpu_custom_call.1} parent=5 // pred_fallthru
        _
    $region6: #{tpu_custom_call.1} parent=1 // loop_footer
      %s34 = sadd.s32 1, %s30
    $region7: #{tpu_custom_call.1} parent=1 // loop_footer_branch
      %29 = sbr.rel target = $region3
    $region8: #{tpu_custom_call.1} parent=1 // loop_exit
      _
    %2079 = vsyncpa [#allocation3], 1
    %s2080 = scalar_lea.sflag [#allocation3], 1
    %2081 = vsyncpa %s2080, 1
    %2082 = vsyncpa [#allocation6], 1
    %2083 = vsyncpa [#allocation4], 1
    %s2084 = scalar_lea.sflag [#allocation4], 1
    %2085 = vsyncpa %s2084, 1

</llo_original>
